<compile_context>
chip_gen: v6e
topology: v6e:2x2x1
jax: 0.10.0
libtpu: 0.0.40
codegen_flags: <defaults>
</compile_context>

<pallas_src>
import functools

import jax
import jax.numpy as jnp
import numpy as np
from jax.experimental import pallas as pl
from jax.experimental.pallas import tpu as pltpu


def _layer_norm(x, gamma, beta, eps=1e-5):
    mu = jnp.mean(x, axis=-1, keepdims=True)
    var = jnp.mean((x - mu) ** 2, axis=-1, keepdims=True)
    return (x - mu) * jax.lax.rsqrt(var + eps) * gamma + beta


def _transformer_layer_kernel(
    xfull_ref, mask_ref,
    wq_ref, wkv_ref, wo_ref, bo_ref,
    wa1_ref, ba1_ref, wa2_ref, ba2_ref,
    g1_ref, b1_ref,
    wf1_ref, bf1_ref, wf2_ref, bf2_ref,
    g2_ref, b2_ref,
    out_ref,
    k_scr, v_scr,
    *, n_head, tq,
):
    qi = pl.program_id(1)
    L, D = xfull_ref.shape[1], xfull_ref.shape[2]
    dh = D // n_head

    # ---- K/V cache: one full-width (L,D)@(D,2D) projection per batch element, persists in VMEM ----
    # K is stored transposed (dh, L) so the per-tile score matmul is a plain (TQ,dh)@(dh,L) dot.
    @pl.when(qi == 0)
    def _():
        xf = xfull_ref[0].astype(jnp.bfloat16)                                   # (L, D)
        kv = jnp.dot(xf, wkv_ref[...], preferred_element_type=jnp.float32)       # (L, 2D)
        for h in range(n_head):
            k_scr[h] = kv[:, h * dh:(h + 1) * dh].T.astype(jnp.bfloat16)         # (dh, L)
            v_scr[h] = kv[:, D + h * dh:D + (h + 1) * dh].astype(jnp.bfloat16)   # (L, dh)

    # query tile sliced from the already-resident full-x block (no second HBM read of x)
    q_start = pl.multiple_of(qi * tq, tq)
    x = xfull_ref[0, pl.ds(q_start, tq), :]                                      # (TQ, D) f32 residual
    x_bf = x.astype(jnp.bfloat16)

    # additive key-padding bias, computed once per query tile (hoisted out of the head loop)
    mask = mask_ref[0]                                                           # (1, L), 1=valid 0=pad
    key_bias = jnp.where(mask == 0.0, -1e9, 0.0).astype(jnp.float32)

    # ---- MultiHeadAttn ----
    # Full-width Q projection: one (TQ,D)@(D,D) MXU matmul instead of H underfilled (D,dh) dots.
    q_full = jnp.dot(x_bf, wq_ref[...],                                          # 1/scale folded into wq
                     preferred_element_type=jnp.float32).astype(jnp.bfloat16)    # (TQ, D)
    ctxs = []
    for h in range(n_head):
        qh = q_full[:, h * dh:(h + 1) * dh]                                      # (TQ, dh) bf16
        s = jnp.dot(qh, k_scr[h], preferred_element_type=jnp.float32)            # (TQ, L)
        s = s + key_bias
        m = jnp.max(s, axis=-1, keepdims=True)
        e = jnp.exp(s - m)
        p = e * pl.reciprocal(jnp.sum(e, axis=-1, keepdims=True), approx=True)
        ctxs.append(jnp.dot(p.astype(jnp.bfloat16), v_scr[h],
                            preferred_element_type=jnp.float32))                 # (TQ, dh)
    # head-concatenated context -> single full-width output projection (lane-dense)
    ctx = jnp.concatenate(ctxs, axis=-1).astype(jnp.bfloat16)                    # (TQ, D)
    attn = jnp.dot(ctx, wo_ref[...], preferred_element_type=jnp.float32) + bo_ref[...]

    # ---- Adapter: ff1 -> ReLU -> ff2 ----
    a = jnp.dot(attn.astype(jnp.bfloat16), wa1_ref[...],
                preferred_element_type=jnp.float32) + ba1_ref[...]
    a = jnp.maximum(a, 0.0)
    a = jnp.dot(a.astype(jnp.bfloat16), wa2_ref[...],
                preferred_element_type=jnp.float32) + ba2_ref[...]

    # residual + norm1 (after_norm=True)
    x1 = _layer_norm(a + x, g1_ref[...], b1_ref[...])

    # ---- FFN: Linear -> ReLU -> Linear ----
    f = jnp.dot(x1.astype(jnp.bfloat16), wf1_ref[...],
                preferred_element_type=jnp.float32) + bf1_ref[...]
    f = jnp.maximum(f, 0.0)
    f = jnp.dot(f.astype(jnp.bfloat16), wf2_ref[...],
                preferred_element_type=jnp.float32) + bf2_ref[...]

    # residual + norm2 (after_norm=True)
    x2 = _layer_norm(x1 + f, g2_ref[...], b2_ref[...])
    out_ref[0] = x2.astype(out_ref.dtype)


def _tpu_budget():
    """Per-generation VMEM limit and query-tile cap."""
    vmem_cap = 128 * 1024 * 1024
    try:
        vmem_cap = int(pltpu.get_tpu_info().vmem_capacity_bytes)
    except Exception:
        pass
    # ~8 MiB headroom, cap at 100 MiB: ~100 MiB on v5e/v6e (128 MiB), ~56 MiB on v7x (64 MiB).
    vmem_limit = max(32 * 1024 * 1024, min(vmem_cap - 8 * 1024 * 1024, 100 * 1024 * 1024))
    tq_cap = 256
    try:
        kind = jax.devices()[0].device_kind.lower()
        if ("v5 lite" in kind) or ("v5e" in kind) or ("v5lite" in kind):
            tq_cap = 128   # v5e MXU is 128x128: TQ>128 only inflates transient VMEM/spills
    except Exception:
        pass
    return vmem_limit, tq_cap


def _pick_tq(L, cap):
    if L <= cap:
        return L
    for tq in (256, 128, 64, 32, 16, 8):
        if tq <= cap and L % tq == 0:
            return tq
    return L   # TODO(synk): pad ragged L to a multiple of 128 in the wrapper instead of TQ=L fallback


def transformer_layer_pallas(x, mask3, kp, n_head):
    B, L, D = x.shape
    dh = D // n_head
    A = kp["wa1"].shape[1]
    FF = kp["wf1"].shape[1]
    vmem_limit, tq_cap = _tpu_budget()
    TQ = _pick_tq(L, tq_cap)
    n_qt = L // TQ

    kernel = functools.partial(_transformer_layer_kernel, n_head=n_head, tq=TQ)

    # Resident weights: constant index_map + single buffer (fetched once; half the VMEM of the
    # default double-buffered pipeline).
    def w_spec(shape):
        nd = len(shape)
        return pl.BlockSpec(shape, lambda b, qi: (0,) * nd,
                            pipeline_mode=pl.Buffered(1))

    in_specs = [
        pl.BlockSpec((1, L, D), lambda b, qi: (b, 0, 0)),   # full x: K/V source + query-tile slices
        pl.BlockSpec((1, 1, L), lambda b, qi: (b, 0, 0)),   # key mask
        w_spec((D, D)),                                     # wq (1/scale folded, bf16)
        w_spec((D, 2 * D)),                                 # wkv = [Wk | Wv]
        w_spec((D, D)),                                     # wo (output projection)
        w_spec((1, D)),                                     # bo
        w_spec((D, A)), w_spec((1, A)),                     # adapter ff1
        w_spec((A, D)), w_spec((1, D)),                     # adapter ff2
        w_spec((1, D)), w_spec((1, D)),                     # norm1 gamma/beta
        w_spec((D, FF)), w_spec((1, FF)),                   # ffn linear1
        w_spec((FF, D)), w_spec((1, D)),                    # ffn linear2
        w_spec((1, D)), w_spec((1, D)),                     # norm2 gamma/beta
    ]

    return pl.pallas_call(
        kernel,
        out_shape=jax.ShapeDtypeStruct((B, L, D), x.dtype),
        grid=(B, n_qt),
        in_specs=in_specs,
        out_specs=pl.BlockSpec((1, TQ, D), lambda b, qi: (b, qi, 0)),
        scratch_shapes=[
            pltpu.VMEM((n_head, dh, L), jnp.bfloat16),      # K cache, transposed per head
            pltpu.VMEM((n_head, L, dh), jnp.bfloat16),      # V cache
        ],
        compiler_params=pltpu.CompilerParams(
            # NOTE: on v7x (2 TCs) only the B axis is sharded across cores, so B>=2 is needed for
            # full throughput; qi cannot be parallel because the qi==0 K/V-cache trick is sequential.
            dimension_semantics=("parallel", "arbitrary"),
            vmem_limit_bytes=vmem_limit,
        ),
    )(
        x, mask3,
        kp["wq"], kp["wkv"], kp["wo"], kp["bo"],
        kp["wa1"], kp["ba1"], kp["wa2"], kp["ba2"],
        kp["g1"], kp["b1"],
        kp["wf1"], kp["bf1"], kp["wf2"], kp["bf2"],
        kp["g2"], kp["b2"],
    )


def prepare_kernel_params(p, n_head, scale):
    """Module-layout f32 params -> kernel layout: bf16 matmul weights, 1/scale folded into Wq."""
    D = p["wfc"].shape[0]
    wqkv = p["wqkv"]
    wq, wkv = wqkv[:, :D], wqkv[:, D:]
    return dict(
        wq=(wq / scale).astype(jnp.bfloat16),               # (D, D)
        wkv=wkv.astype(jnp.bfloat16),                       # (D, 2D) = [Wk | Wv]
        wo=p["wfc"].astype(jnp.bfloat16),                   # (D, D)
        bo=p["bfc"],
        wa1=p["wa1"].astype(jnp.bfloat16), ba1=p["ba1"],
        wa2=p["wa2"].astype(jnp.bfloat16), ba2=p["ba2"],
        g1=p["g1"], b1=p["b1"],
        wf1=p["wf1"].astype(jnp.bfloat16), bf1=p["bf1"],
        wf2=p["wf2"].astype(jnp.bfloat16), bf2=p["bf2"],
        g2=p["g2"], b2=p["b2"],
    )


def transformer_encoder_pallas(x, mask, params, n_head, scale):
    """pos_embed=None path of TransformerEncoder.forward (eval mode)."""
    mask3 = mask.reshape(mask.shape[0], 1, mask.shape[1])
    for p in params:
        kp = prepare_kernel_params(p, n_head, scale)
        x = transformer_layer_pallas(x, mask3, kp, n_head)
    return x


# ---------------- pure-JAX reference (for self-check) ----------------
# Matmul operands are cast to bf16 exactly like the kernel (f32 accumulation), so the check
# isolates kernel structure; remaining deltas are the approx softmax reciprocal and summation order.
def _mm(a, b):
    return jnp.dot(a.astype(jnp.bfloat16), b.astype(jnp.bfloat16),
                   preferred_element_type=jnp.float32)


def _layer_ref(x, mask, p, n_head, scale):
    B, L, D = x.shape
    dh = D // n_head
    qkv = _mm(x, p["wqkv"])
    q, k, v = qkv[..., :D], qkv[..., D:2 * D], qkv[..., 2 * D:]
    q = q.reshape(B, L, n_head, dh).transpose(0, 2, 1, 3)
    k = k.reshape(B, L, n_head, dh).transpose(0, 2, 1, 3)
    v = v.reshape(B, L, n_head, dh).transpose(0, 2, 1, 3)
    s = jnp.einsum("bhqd,bhkd->bhqk", q.astype(jnp.bfloat16), k.astype(jnp.bfloat16),
                   preferred_element_type=jnp.float32) / scale
    s = jnp.where(mask[:, None, None, :] == 0.0, -jnp.inf, s)
    m = jnp.max(s, axis=-1, keepdims=True)
    e = jnp.exp(s - m)
    a = e / jnp.sum(e, axis=-1, keepdims=True)
    o = jnp.einsum("bhqk,bhkd->bhqd", a.astype(jnp.bfloat16), v.astype(jnp.bfloat16),
                   preferred_element_type=jnp.float32)
    o = o.transpose(0, 2, 1, 3).reshape(B, L, D)
    o = _mm(o, p["wfc"]) + p["bfc"]
    ad = _mm(jnp.maximum(_mm(o, p["wa1"]) + p["ba1"], 0.0), p["wa2"]) + p["ba2"]
    x1 = _layer_norm(ad + x, p["g1"], p["b1"])
    f = _mm(jnp.maximum(_mm(x1, p["wf1"]) + p["bf1"], 0.0), p["wf2"]) + p["bf2"]
    return _layer_norm(x1 + f, p["g2"], p["b2"])


def transformer_encoder_ref(x, mask, params, n_head, scale):
    for p in params:
        x = _layer_ref(x, mask, p, n_head, scale)
    return x


# ---------------- deterministic parameter init ----------------
def init_params(key, num_layers, d_model, ff_dim):
    A = 2 * d_model
    params = []
    for i in range(num_layers):
        ks = jax.random.split(jax.random.fold_in(key, i), 12)

        def rn(k, shape, fan_in):
            return (jax.random.normal(k, shape, jnp.float32) / np.sqrt(fan_in)).astype(jnp.float32)

        p = dict(
            wqkv=rn(ks[0], (d_model, 3 * d_model), d_model),   # qkv_linear (no bias), pre-transposed
            wfc=rn(ks[1], (d_model, d_model), d_model),
            bfc=rn(ks[2], (1, d_model), d_model),
            wa1=rn(ks[3], (d_model, A), d_model),
            ba1=rn(ks[4], (1, A), d_model),
            wa2=rn(ks[5], (A, d_model), A),
            ba2=rn(ks[6], (1, d_model), A),
            g1=jnp.ones((1, d_model), jnp.float32),
            b1=jnp.zeros((1, d_model), jnp.float32),
            wf1=rn(ks[7], (d_model, ff_dim), d_model),
            bf1=rn(ks[8], (1, ff_dim), d_model),
            wf2=rn(ks[9], (ff_dim, d_model), ff_dim),
            bf2=rn(ks[10], (1, d_model), ff_dim),
            g2=jnp.ones((1, d_model), jnp.float32),
            b2=jnp.zeros((1, d_model), jnp.float32),
        )
        params.append(p)
    return params


if __name__ == "__main__":
    B, L, D, H, FF, NUM_LAYERS = 2, 8, 32, 4, 64, 2
    SCALE = 1.0  # scale=False in TransformerEncoder -> divide by 1

    key = jax.random.PRNGKey(0)
    kx, kparam = jax.random.split(key)
    x = jax.random.normal(kx, (B, L, D), jnp.float32)
    mask = jnp.ones((B, L), jnp.float32).at[1, 6:].set(0.0)  # second sequence has 2 padding tokens

    params = init_params(kparam, NUM_LAYERS, D, FF)

    out = transformer_encoder_pallas(x, mask, params, n_head=H, scale=SCALE)
    out = jax.block_until_ready(out)
    assert out.shape == (B, L, D)

    ref = transformer_encoder_ref(x, mask, params, n_head=H, scale=SCALE)
    np.testing.assert_allclose(np.asarray(out), np.asarray(ref), rtol=3e-2, atol=3e-2)

    print("KERNEL_OK")
</pallas_src>

<mosaic_0001>
module attributes {stable_mosaic.version = 11 : i64} {
  func.func @_transformer_layer_kernel(%arg0: i32, %arg1: i32, %arg2: memref<1x8x32xf32, #tpu.memory_space<vmem>>, %arg3: memref<1x1x8xf32, #tpu.memory_space<vmem>>, %arg4: memref<32x32xbf16, #tpu.memory_space<vmem>>, %arg5: memref<32x64xbf16, #tpu.memory_space<vmem>>, %arg6: memref<32x32xbf16, #tpu.memory_space<vmem>>, %arg7: memref<1x32xf32, #tpu.memory_space<vmem>>, %arg8: memref<32x64xbf16, #tpu.memory_space<vmem>>, %arg9: memref<1x64xf32, #tpu.memory_space<vmem>>, %arg10: memref<64x32xbf16, #tpu.memory_space<vmem>>, %arg11: memref<1x32xf32, #tpu.memory_space<vmem>>, %arg12: memref<1x32xf32, #tpu.memory_space<vmem>>, %arg13: memref<1x32xf32, #tpu.memory_space<vmem>>, %arg14: memref<32x64xbf16, #tpu.memory_space<vmem>>, %arg15: memref<1x64xf32, #tpu.memory_space<vmem>>, %arg16: memref<64x32xbf16, #tpu.memory_space<vmem>>, %arg17: memref<1x32xf32, #tpu.memory_space<vmem>>, %arg18: memref<1x32xf32, #tpu.memory_space<vmem>>, %arg19: memref<1x32xf32, #tpu.memory_space<vmem>>, %arg20: memref<1x8x32xf32, #tpu.memory_space<vmem>>, %arg21: memref<4x8x8xbf16, #tpu.memory_space<vmem>>, %arg22: memref<4x8x8xbf16, #tpu.memory_space<vmem>>) attributes {dimension_semantics = [#tpu.dimension_semantics<parallel>, #tpu.dimension_semantics<arbitrary>], iteration_bounds = array<i64: 2, 1>, scalar_prefetch = 0 : i64, scratch_operands = 2 : i64, tpu.core_type = #tpu.core_type<tc>, window_params = [{transform_indices = @transform_0, window_bounds = array<i64: 1, 8, 32>}, {transform_indices = @transform_1, window_bounds = array<i64: 1, 1, 8>}, {pipeline_mode = #tpu.pipeline_mode<synchronous>, transform_indices = @transform_2, window_bounds = array<i64: 32, 32>}, {pipeline_mode = #tpu.pipeline_mode<synchronous>, transform_indices = @transform_3, window_bounds = array<i64: 32, 64>}, {pipeline_mode = #tpu.pipeline_mode<synchronous>, transform_indices = @transform_4, window_bounds = array<i64: 32, 32>}, {pipeline_mode = #tpu.pipeline_mode<synchronous>, transform_indices = @transform_5, window_bounds = array<i64: 1, 32>}, {pipeline_mode = #tpu.pipeline_mode<synchronous>, transform_indices = @transform_6, window_bounds = array<i64: 32, 64>}, {pipeline_mode = #tpu.pipeline_mode<synchronous>, transform_indices = @transform_7, window_bounds = array<i64: 1, 64>}, {pipeline_mode = #tpu.pipeline_mode<synchronous>, transform_indices = @transform_8, window_bounds = array<i64: 64, 32>}, {pipeline_mode = #tpu.pipeline_mode<synchronous>, transform_indices = @transform_9, window_bounds = array<i64: 1, 32>}, {pipeline_mode = #tpu.pipeline_mode<synchronous>, transform_indices = @transform_10, window_bounds = array<i64: 1, 32>}, {pipeline_mode = #tpu.pipeline_mode<synchronous>, transform_indices = @transform_11, window_bounds = array<i64: 1, 32>}, {pipeline_mode = #tpu.pipeline_mode<synchronous>, transform_indices = @transform_12, window_bounds = array<i64: 32, 64>}, {pipeline_mode = #tpu.pipeline_mode<synchronous>, transform_indices = @transform_13, window_bounds = array<i64: 1, 64>}, {pipeline_mode = #tpu.pipeline_mode<synchronous>, transform_indices = @transform_14, window_bounds = array<i64: 64, 32>}, {pipeline_mode = #tpu.pipeline_mode<synchronous>, transform_indices = @transform_15, window_bounds = array<i64: 1, 32>}, {pipeline_mode = #tpu.pipeline_mode<synchronous>, transform_indices = @transform_16, window_bounds = array<i64: 1, 32>}, {pipeline_mode = #tpu.pipeline_mode<synchronous>, transform_indices = @transform_17, window_bounds = array<i64: 1, 32>}, {transform_indices = @transform_18, window_bounds = array<i64: 1, 8, 32>}]} {
    %c0_i32 = arith.constant 0 : i32
    %0 = arith.cmpi eq, %arg1, %c0_i32 : i32
    %1 = arith.extui %0 : i1 to i32
    %c0_i32_0 = arith.constant 0 : i32
    %2 = arith.cmpi ne, %1, %c0_i32_0 : i32
    scf.if %2 {
      %c0_95 = arith.constant 0 : index
      %c0_96 = arith.constant 0 : index
      %c0_97 = arith.constant 0 : index
      %187 = vector.load %arg2[%c0_95, %c0_96, %c0_97] : memref<1x8x32xf32, #tpu.memory_space<vmem>>, vector<1x8x32xf32>
      %188 = vector.shape_cast %187 : vector<1x8x32xf32> to vector<8x32xf32>
      %189 = arith.truncf %188 : vector<8x32xf32> to vector<8x32xbf16>
      %c0_98 = arith.constant 0 : index
      %c0_99 = arith.constant 0 : index
      %190 = vector.load %arg5[%c0_98, %c0_99] : memref<32x64xbf16, #tpu.memory_space<vmem>>, vector<32x64xbf16>
      %cst_100 = arith.constant dense<0.000000e+00> : vector<8x64xf32>
      %191 = tpu.matmul %189, %190, %cst_100 {dimension_numbers = #tpu.dot_dimension_numbers<[1], [0], [0], [1], [0, 0, 1, 1], [], []>} : vector<8x32xbf16>, vector<32x64xbf16>, vector<8x64xf32> -> vector<8x64xf32>
      %192 = vector.extract_strided_slice %191 {offsets = [0, 0], sizes = [8, 8], strides = [1, 1]} : vector<8x64xf32> to vector<8x8xf32>
      %193 = tpu.transpose %192, [1, 0] : vector<8x8xf32> -> vector<8x8xf32>
      %194 = arith.truncf %193 : vector<8x8xf32> to vector<8x8xbf16>
      %c0_101 = arith.constant 0 : index
      %c0_102 = arith.constant 0 : index
      %c0_103 = arith.constant 0 : index
      %195 = vector.load %arg21[%c0_101, %c0_102, %c0_103] : memref<4x8x8xbf16, #tpu.memory_space<vmem>>, vector<1x8x8xbf16>
      %196 = vector.shape_cast %195 : vector<1x8x8xbf16> to vector<8x8xbf16>
      %197 = vector.shape_cast %194 : vector<8x8xbf16> to vector<1x8x8xbf16>
      tpu.vector_store %arg21[%c0_101, %c0_102, %c0_103], %197 {strides = array<i32>} : memref<4x8x8xbf16, #tpu.memory_space<vmem>>, vector<1x8x8xbf16>,
      %198 = vector.extract_strided_slice %191 {offsets = [0, 32], sizes = [8, 8], strides = [1, 1]} : vector<8x64xf32> to vector<8x8xf32>
      %199 = arith.truncf %198 : vector<8x8xf32> to vector<8x8xbf16>
      %c0_104 = arith.constant 0 : index
      %c0_105 = arith.constant 0 : index
      %c0_106 = arith.constant 0 : index
      %200 = vector.load %arg22[%c0_104, %c0_105, %c0_106] : memref<4x8x8xbf16, #tpu.memory_space<vmem>>, vector<1x8x8xbf16>
      %201 = vector.shape_cast %200 : vector<1x8x8xbf16> to vector<8x8xbf16>
      %202 = vector.shape_cast %199 : vector<8x8xbf16> to vector<1x8x8xbf16>
      tpu.vector_store %arg22[%c0_104, %c0_105, %c0_106], %202 {strides = array<i32>} : memref<4x8x8xbf16, #tpu.memory_space<vmem>>, vector<1x8x8xbf16>,
      %203 = vector.extract_strided_slice %191 {offsets = [0, 8], sizes = [8, 8], strides = [1, 1]} : vector<8x64xf32> to vector<8x8xf32>
      %204 = tpu.transpose %203, [1, 0] : vector<8x8xf32> -> vector<8x8xf32>
      %205 = arith.truncf %204 : vector<8x8xf32> to vector<8x8xbf16>
      %c1_107 = arith.constant 1 : index
      %c0_108 = arith.constant 0 : index
      %c0_109 = arith.constant 0 : index
      %206 = vector.load %arg21[%c1_107, %c0_108, %c0_109] : memref<4x8x8xbf16, #tpu.memory_space<vmem>>, vector<1x8x8xbf16>
      %207 = vector.shape_cast %206 : vector<1x8x8xbf16> to vector<8x8xbf16>
      %208 = vector.shape_cast %205 : vector<8x8xbf16> to vector<1x8x8xbf16>
      tpu.vector_store %arg21[%c1_107, %c0_108, %c0_109], %208 {strides = array<i32>} : memref<4x8x8xbf16, #tpu.memory_space<vmem>>, vector<1x8x8xbf16>,
      %209 = vector.extract_strided_slice %191 {offsets = [0, 40], sizes = [8, 8], strides = [1, 1]} : vector<8x64xf32> to vector<8x8xf32>
      %210 = arith.truncf %209 : vector<8x8xf32> to vector<8x8xbf16>
      %c1_110 = arith.constant 1 : index
      %c0_111 = arith.constant 0 : index
      %c0_112 = arith.constant 0 : index
      %211 = vector.load %arg22[%c1_110, %c0_111, %c0_112] : memref<4x8x8xbf16, #tpu.memory_space<vmem>>, vector<1x8x8xbf16>
      %212 = vector.shape_cast %211 : vector<1x8x8xbf16> to vector<8x8xbf16>
      %213 = vector.shape_cast %210 : vector<8x8xbf16> to vector<1x8x8xbf16>
      tpu.vector_store %arg22[%c1_110, %c0_111, %c0_112], %213 {strides = array<i32>} : memref<4x8x8xbf16, #tpu.memory_space<vmem>>, vector<1x8x8xbf16>,
      %214 = vector.extract_strided_slice %191 {offsets = [0, 16], sizes = [8, 8], strides = [1, 1]} : vector<8x64xf32> to vector<8x8xf32>
      %215 = tpu.transpose %214, [1, 0] : vector<8x8xf32> -> vector<8x8xf32>
      %216 = arith.truncf %215 : vector<8x8xf32> to vector<8x8xbf16>
      %c2_113 = arith.constant 2 : index
      %c0_114 = arith.constant 0 : index
      %c0_115 = arith.constant 0 : index
      %217 = vector.load %arg21[%c2_113, %c0_114, %c0_115] : memref<4x8x8xbf16, #tpu.memory_space<vmem>>, vector<1x8x8xbf16>
      %218 = vector.shape_cast %217 : vector<1x8x8xbf16> to vector<8x8xbf16>
      %219 = vector.shape_cast %216 : vector<8x8xbf16> to vector<1x8x8xbf16>
      tpu.vector_store %arg21[%c2_113, %c0_114, %c0_115], %219 {strides = array<i32>} : memref<4x8x8xbf16, #tpu.memory_space<vmem>>, vector<1x8x8xbf16>,
      %220 = vector.extract_strided_slice %191 {offsets = [0, 48], sizes = [8, 8], strides = [1, 1]} : vector<8x64xf32> to vector<8x8xf32>
      %221 = arith.truncf %220 : vector<8x8xf32> to vector<8x8xbf16>
      %c2_116 = arith.constant 2 : index
      %c0_117 = arith.constant 0 : index
      %c0_118 = arith.constant 0 : index
      %222 = vector.load %arg22[%c2_116, %c0_117, %c0_118] : memref<4x8x8xbf16, #tpu.memory_space<vmem>>, vector<1x8x8xbf16>
      %223 = vector.shape_cast %222 : vector<1x8x8xbf16> to vector<8x8xbf16>
      %224 = vector.shape_cast %221 : vector<8x8xbf16> to vector<1x8x8xbf16>
      tpu.vector_store %arg22[%c2_116, %c0_117, %c0_118], %224 {strides = array<i32>} : memref<4x8x8xbf16, #tpu.memory_space<vmem>>, vector<1x8x8xbf16>,
      %225 = vector.extract_strided_slice %191 {offsets = [0, 24], sizes = [8, 8], strides = [1, 1]} : vector<8x64xf32> to vector<8x8xf32>
      %226 = tpu.transpose %225, [1, 0] : vector<8x8xf32> -> vector<8x8xf32>
      %227 = arith.truncf %226 : vector<8x8xf32> to vector<8x8xbf16>
      %c3_119 = arith.constant 3 : index
      %c0_120 = arith.constant 0 : index
      %c0_121 = arith.constant 0 : index
      %228 = vector.load %arg21[%c3_119, %c0_120, %c0_121] : memref<4x8x8xbf16, #tpu.memory_space<vmem>>, vector<1x8x8xbf16>
      %229 = vector.shape_cast %228 : vector<1x8x8xbf16> to vector<8x8xbf16>
      %230 = vector.shape_cast %227 : vector<8x8xbf16> to vector<1x8x8xbf16>
      tpu.vector_store %arg21[%c3_119, %c0_120, %c0_121], %230 {strides = array<i32>} : memref<4x8x8xbf16, #tpu.memory_space<vmem>>, vector<1x8x8xbf16>,
      %231 = vector.extract_strided_slice %191 {offsets = [0, 56], sizes = [8, 8], strides = [1, 1]} : vector<8x64xf32> to vector<8x8xf32>
      %232 = arith.truncf %231 : vector<8x8xf32> to vector<8x8xbf16>
      %c3_122 = arith.constant 3 : index
      %c0_123 = arith.constant 0 : index
      %c0_124 = arith.constant 0 : index
      %233 = vector.load %arg22[%c3_122, %c0_123, %c0_124] : memref<4x8x8xbf16, #tpu.memory_space<vmem>>, vector<1x8x8xbf16>
      %234 = vector.shape_cast %233 : vector<1x8x8xbf16> to vector<8x8xbf16>
      %235 = vector.shape_cast %232 : vector<8x8xbf16> to vector<1x8x8xbf16>
      tpu.vector_store %arg22[%c3_122, %c0_123, %c0_124], %235 {strides = array<i32>} : memref<4x8x8xbf16, #tpu.memory_space<vmem>>, vector<1x8x8xbf16>,
    } else {
    }
    %c8_i32 = arith.constant 8 : i32
    %3 = arith.muli %arg1, %c8_i32 : i32
    %4 = tpu.assume_multiple %3, 8 : i32
    %c0 = arith.constant 0 : index
    %5 = arith.index_cast %4 : i32 to index
    %c0_1 = arith.constant 0 : index
    %6 = vector.load %arg2[%c0, %5, %c0_1] : memref<1x8x32xf32, #tpu.memory_space<vmem>>, vector<1x8x32xf32>
    %7 = vector.shape_cast %6 : vector<1x8x32xf32> to vector<8x32xf32>
    %8 = arith.truncf %7 : vector<8x32xf32> to vector<8x32xbf16>
    %c0_2 = arith.constant 0 : index
    %c0_3 = arith.constant 0 : index
    %c0_4 = arith.constant 0 : index
    %9 = vector.load %arg3[%c0_2, %c0_3, %c0_4] : memref<1x1x8xf32, #tpu.memory_space<vmem>>, vector<1x1x8xf32>
    %10 = vector.shape_cast %9 : vector<1x1x8xf32> to vector<1x8xf32>
    %cst = arith.constant 0.000000e+00 : f32
    %11 = vector.broadcast %cst : f32 to vector<1x8xf32>
    %12 = arith.cmpf oeq, %10, %11 : vector<1x8xf32>
    %cst_5 = arith.constant -1.000000e+09 : f32
    %cst_6 = arith.constant 0.000000e+00 : f32
    %13 = vector.broadcast %cst_5 : f32 to vector<1x8xf32>
    %14 = vector.broadcast %cst_6 : f32 to vector<1x8xf32>
    %15 = arith.select %12, %13, %14 : vector<1x8xi1>, vector<1x8xf32>
    %c0_7 = arith.constant 0 : index
    %c0_8 = arith.constant 0 : index
    %16 = vector.load %arg4[%c0_7, %c0_8] : memref<32x32xbf16, #tpu.memory_space<vmem>>, vector<32x32xbf16>
    %cst_9 = arith.constant dense<0.000000e+00> : vector<8x32xf32>
    %17 = tpu.matmul %8, %16, %cst_9 {dimension_numbers = #tpu.dot_dimension_numbers<[1], [0], [0], [1], [0, 0, 1, 1], [], []>} : vector<8x32xbf16>, vector<32x32xbf16>, vector<8x32xf32> -> vector<8x32xf32>
    %18 = arith.truncf %17 : vector<8x32xf32> to vector<8x32xbf16>
    %19 = vector.extract_strided_slice %18 {offsets = [0, 0], sizes = [8, 8], strides = [1, 1]} : vector<8x32xbf16> to vector<8x8xbf16>
    %c0_10 = arith.constant 0 : index
    %c0_11 = arith.constant 0 : index
    %c0_12 = arith.constant 0 : index
    %20 = vector.load %arg21[%c0_10, %c0_11, %c0_12] : memref<4x8x8xbf16, #tpu.memory_space<vmem>>, vector<1x8x8xbf16>
    %21 = vector.shape_cast %20 : vector<1x8x8xbf16> to vector<8x8xbf16>
    %cst_13 = arith.constant dense<0.000000e+00> : vector<8x8xf32>
    %22 = tpu.matmul %19, %21, %cst_13 {dimension_numbers = #tpu.dot_dimension_numbers<[1], [0], [0], [1], [0, 0, 1, 1], [], []>} : vector<8x8xbf16>, vector<8x8xbf16>, vector<8x8xf32> -> vector<8x8xf32>
    %23 = vector.broadcast %15 : vector<1x8xf32> to vector<8x8xf32>
    %24 = arith.addf %22, %23 : vector<8x8xf32>
    %cst_14 = arith.constant dense<0xFF800000> : vector<8xf32>
    %25 = vector.multi_reduction <maximumf>, %24, %cst_14 [1] : vector<8x8xf32> to vector<8xf32>
    %26 = vector.shape_cast %25 : vector<8xf32> to vector<8x1xf32>
    %27 = vector.broadcast %26 : vector<8x1xf32> to vector<8x8xf32>
    %28 = arith.subf %24, %27 : vector<8x8xf32>
    %29 = math.exp %28 : vector<8x8xf32>
    %cst_15 = arith.constant dense<0.000000e+00> : vector<8xf32>
    %30 = vector.multi_reduction <add>, %29, %cst_15 [1] : vector<8x8xf32> to vector<8xf32>
    %31 = vector.shape_cast %30 : vector<8xf32> to vector<8x1xf32>
    %32 = tpu.reciprocal %31 {approx = true} : vector<8x1xf32> -> vector<8x1xf32>
    %33 = vector.broadcast %32 : vector<8x1xf32> to vector<8x8xf32>
    %34 = arith.mulf %29, %33 : vector<8x8xf32>
    %35 = arith.truncf %34 : vector<8x8xf32> to vector<8x8xbf16>
    %c0_16 = arith.constant 0 : index
    %c0_17 = arith.constant 0 : index
    %c0_18 = arith.constant 0 : index
    %36 = vector.load %arg22[%c0_16, %c0_17, %c0_18] : memref<4x8x8xbf16, #tpu.memory_space<vmem>>, vector<1x8x8xbf16>
    %37 = vector.shape_cast %36 : vector<1x8x8xbf16> to vector<8x8xbf16>
    %cst_19 = arith.constant dense<0.000000e+00> : vector<8x8xf32>
    %38 = tpu.matmul %35, %37, %cst_19 {dimension_numbers = #tpu.dot_dimension_numbers<[1], [0], [0], [1], [0, 0, 1, 1], [], []>} : vector<8x8xbf16>, vector<8x8xbf16>, vector<8x8xf32> -> vector<8x8xf32>
    %39 = vector.extract_strided_slice %18 {offsets = [0, 8], sizes = [8, 8], strides = [1, 1]} : vector<8x32xbf16> to vector<8x8xbf16>
    %c1 = arith.constant 1 : index
    %c0_20 = arith.constant 0 : index
    %c0_21 = arith.constant 0 : index
    %40 = vector.load %arg21[%c1, %c0_20, %c0_21] : memref<4x8x8xbf16, #tpu.memory_space<vmem>>, vector<1x8x8xbf16>
    %41 = vector.shape_cast %40 : vector<1x8x8xbf16> to vector<8x8xbf16>
    %cst_22 = arith.constant dense<0.000000e+00> : vector<8x8xf32>
    %42 = tpu.matmul %39, %41, %cst_22 {dimension_numbers = #tpu.dot_dimension_numbers<[1], [0], [0], [1], [0, 0, 1, 1], [], []>} : vector<8x8xbf16>, vector<8x8xbf16>, vector<8x8xf32> -> vector<8x8xf32>
    %43 = vector.broadcast %15 : vector<1x8xf32> to vector<8x8xf32>
    %44 = arith.addf %42, %43 : vector<8x8xf32>
    %cst_23 = arith.constant dense<0xFF800000> : vector<8xf32>
    %45 = vector.multi_reduction <maximumf>, %44, %cst_23 [1] : vector<8x8xf32> to vector<8xf32>
    %46 = vector.shape_cast %45 : vector<8xf32> to vector<8x1xf32>
    %47 = vector.broadcast %46 : vector<8x1xf32> to vector<8x8xf32>
    %48 = arith.subf %44, %47 : vector<8x8xf32>
    %49 = math.exp %48 : vector<8x8xf32>
    %cst_24 = arith.constant dense<0.000000e+00> : vector<8xf32>
    %50 = vector.multi_reduction <add>, %49, %cst_24 [1] : vector<8x8xf32> to vector<8xf32>
    %51 = vector.shape_cast %50 : vector<8xf32> to vector<8x1xf32>
    %52 = tpu.reciprocal %51 {approx = true} : vector<8x1xf32> -> vector<8x1xf32>
    %53 = vector.broadcast %52 : vector<8x1xf32> to vector<8x8xf32>
    %54 = arith.mulf %49, %53 : vector<8x8xf32>
    %55 = arith.truncf %54 : vector<8x8xf32> to vector<8x8xbf16>
    %c1_25 = arith.constant 1 : index
    %c0_26 = arith.constant 0 : index
    %c0_27 = arith.constant 0 : index
    %56 = vector.load %arg22[%c1_25, %c0_26, %c0_27] : memref<4x8x8xbf16, #tpu.memory_space<vmem>>, vector<1x8x8xbf16>
    %57 = vector.shape_cast %56 : vector<1x8x8xbf16> to vector<8x8xbf16>
    %cst_28 = arith.constant dense<0.000000e+00> : vector<8x8xf32>
    %58 = tpu.matmul %55, %57, %cst_28 {dimension_numbers = #tpu.dot_dimension_numbers<[1], [0], [0], [1], [0, 0, 1, 1], [], []>} : vector<8x8xbf16>, vector<8x8xbf16>, vector<8x8xf32> -> vector<8x8xf32>
    %59 = vector.extract_strided_slice %18 {offsets = [0, 16], sizes = [8, 8], strides = [1, 1]} : vector<8x32xbf16> to vector<8x8xbf16>
    %c2 = arith.constant 2 : index
    %c0_29 = arith.constant 0 : index
    %c0_30 = arith.constant 0 : index
    %60 = vector.load %arg21[%c2, %c0_29, %c0_30] : memref<4x8x8xbf16, #tpu.memory_space<vmem>>, vector<1x8x8xbf16>
    %61 = vector.shape_cast %60 : vector<1x8x8xbf16> to vector<8x8xbf16>
    %cst_31 = arith.constant dense<0.000000e+00> : vector<8x8xf32>
    %62 = tpu.matmul %59, %61, %cst_31 {dimension_numbers = #tpu.dot_dimension_numbers<[1], [0], [0], [1], [0, 0, 1, 1], [], []>} : vector<8x8xbf16>, vector<8x8xbf16>, vector<8x8xf32> -> vector<8x8xf32>
    %63 = vector.broadcast %15 : vector<1x8xf32> to vector<8x8xf32>
    %64 = arith.addf %62, %63 : vector<8x8xf32>
    %cst_32 = arith.constant dense<0xFF800000> : vector<8xf32>
    %65 = vector.multi_reduction <maximumf>, %64, %cst_32 [1] : vector<8x8xf32> to vector<8xf32>
    %66 = vector.shape_cast %65 : vector<8xf32> to vector<8x1xf32>
    %67 = vector.broadcast %66 : vector<8x1xf32> to vector<8x8xf32>
    %68 = arith.subf %64, %67 : vector<8x8xf32>
    %69 = math.exp %68 : vector<8x8xf32>
    %cst_33 = arith.constant dense<0.000000e+00> : vector<8xf32>
    %70 = vector.multi_reduction <add>, %69, %cst_33 [1] : vector<8x8xf32> to vector<8xf32>
    %71 = vector.shape_cast %70 : vector<8xf32> to vector<8x1xf32>
    %72 = tpu.reciprocal %71 {approx = true} : vector<8x1xf32> -> vector<8x1xf32>
    %73 = vector.broadcast %72 : vector<8x1xf32> to vector<8x8xf32>
    %74 = arith.mulf %69, %73 : vector<8x8xf32>
    %75 = arith.truncf %74 : vector<8x8xf32> to vector<8x8xbf16>
    %c2_34 = arith.constant 2 : index
    %c0_35 = arith.constant 0 : index
    %c0_36 = arith.constant 0 : index
    %76 = vector.load %arg22[%c2_34, %c0_35, %c0_36] : memref<4x8x8xbf16, #tpu.memory_space<vmem>>, vector<1x8x8xbf16>
    %77 = vector.shape_cast %76 : vector<1x8x8xbf16> to vector<8x8xbf16>
    %cst_37 = arith.constant dense<0.000000e+00> : vector<8x8xf32>
    %78 = tpu.matmul %75, %77, %cst_37 {dimension_numbers = #tpu.dot_dimension_numbers<[1], [0], [0], [1], [0, 0, 1, 1], [], []>} : vector<8x8xbf16>, vector<8x8xbf16>, vector<8x8xf32> -> vector<8x8xf32>
    %79 = vector.extract_strided_slice %18 {offsets = [0, 24], sizes = [8, 8], strides = [1, 1]} : vector<8x32xbf16> to vector<8x8xbf16>
    %c3 = arith.constant 3 : index
    %c0_38 = arith.constant 0 : index
    %c0_39 = arith.constant 0 : index
    %80 = vector.load %arg21[%c3, %c0_38, %c0_39] : memref<4x8x8xbf16, #tpu.memory_space<vmem>>, vector<1x8x8xbf16>
    %81 = vector.shape_cast %80 : vector<1x8x8xbf16> to vector<8x8xbf16>
    %cst_40 = arith.constant dense<0.000000e+00> : vector<8x8xf32>
    %82 = tpu.matmul %79, %81, %cst_40 {dimension_numbers = #tpu.dot_dimension_numbers<[1], [0], [0], [1], [0, 0, 1, 1], [], []>} : vector<8x8xbf16>, vector<8x8xbf16>, vector<8x8xf32> -> vector<8x8xf32>
    %83 = vector.broadcast %15 : vector<1x8xf32> to vector<8x8xf32>
    %84 = arith.addf %82, %83 : vector<8x8xf32>
    %cst_41 = arith.constant dense<0xFF800000> : vector<8xf32>
    %85 = vector.multi_reduction <maximumf>, %84, %cst_41 [1] : vector<8x8xf32> to vector<8xf32>
    %86 = vector.shape_cast %85 : vector<8xf32> to vector<8x1xf32>
    %87 = vector.broadcast %86 : vector<8x1xf32> to vector<8x8xf32>
    %88 = arith.subf %84, %87 : vector<8x8xf32>
    %89 = math.exp %88 : vector<8x8xf32>
    %cst_42 = arith.constant dense<0.000000e+00> : vector<8xf32>
    %90 = vector.multi_reduction <add>, %89, %cst_42 [1] : vector<8x8xf32> to vector<8xf32>
    %91 = vector.shape_cast %90 : vector<8xf32> to vector<8x1xf32>
    %92 = tpu.reciprocal %91 {approx = true} : vector<8x1xf32> -> vector<8x1xf32>
    %93 = vector.broadcast %92 : vector<8x1xf32> to vector<8x8xf32>
    %94 = arith.mulf %89, %93 : vector<8x8xf32>
    %95 = arith.truncf %94 : vector<8x8xf32> to vector<8x8xbf16>
    %c3_43 = arith.constant 3 : index
    %c0_44 = arith.constant 0 : index
    %c0_45 = arith.constant 0 : index
    %96 = vector.load %arg22[%c3_43, %c0_44, %c0_45] : memref<4x8x8xbf16, #tpu.memory_space<vmem>>, vector<1x8x8xbf16>
    %97 = vector.shape_cast %96 : vector<1x8x8xbf16> to vector<8x8xbf16>
    %cst_46 = arith.constant dense<0.000000e+00> : vector<8x8xf32>
    %98 = tpu.matmul %95, %97, %cst_46 {dimension_numbers = #tpu.dot_dimension_numbers<[1], [0], [0], [1], [0, 0, 1, 1], [], []>} : vector<8x8xbf16>, vector<8x8xbf16>, vector<8x8xf32> -> vector<8x8xf32>
    %99 = tpu.concatenate %38, %58, %78, %98 in 1 : vector<8x8xf32>, vector<8x8xf32>, vector<8x8xf32>, vector<8x8xf32> -> vector<8x32xf32>
    %100 = arith.truncf %99 : vector<8x32xf32> to vector<8x32xbf16>
    %c0_47 = arith.constant 0 : index
    %c0_48 = arith.constant 0 : index
    %101 = vector.load %arg6[%c0_47, %c0_48] : memref<32x32xbf16, #tpu.memory_space<vmem>>, vector<32x32xbf16>
    %cst_49 = arith.constant dense<0.000000e+00> : vector<8x32xf32>
    %102 = tpu.matmul %100, %101, %cst_49 {dimension_numbers = #tpu.dot_dimension_numbers<[1], [0], [0], [1], [0, 0, 1, 1], [], []>} : vector<8x32xbf16>, vector<32x32xbf16>, vector<8x32xf32> -> vector<8x32xf32>
    %c0_50 = arith.constant 0 : index
    %c0_51 = arith.constant 0 : index
    %103 = vector.load %arg7[%c0_50, %c0_51] : memref<1x32xf32, #tpu.memory_space<vmem>>, vector<1x32xf32>
    %104 = vector.broadcast %103 : vector<1x32xf32> to vector<8x32xf32>
    %105 = arith.addf %102, %104 : vector<8x32xf32>
    %106 = arith.truncf %105 : vector<8x32xf32> to vector<8x32xbf16>
    %c0_52 = arith.constant 0 : index
    %c0_53 = arith.constant 0 : index
    %107 = vector.load %arg8[%c0_52, %c0_53] : memref<32x64xbf16, #tpu.memory_space<vmem>>, vector<32x64xbf16>
    %cst_54 = arith.constant dense<0.000000e+00> : vector<8x64xf32>
    %108 = tpu.matmul %106, %107, %cst_54 {dimension_numbers = #tpu.dot_dimension_numbers<[1], [0], [0], [1], [0, 0, 1, 1], [], []>} : vector<8x32xbf16>, vector<32x64xbf16>, vector<8x64xf32> -> vector<8x64xf32>
    %c0_55 = arith.constant 0 : index
    %c0_56 = arith.constant 0 : index
    %109 = vector.load %arg9[%c0_55, %c0_56] : memref<1x64xf32, #tpu.memory_space<vmem>>, vector<1x64xf32>
    %110 = vector.broadcast %109 : vector<1x64xf32> to vector<8x64xf32>
    %111 = arith.addf %108, %110 : vector<8x64xf32>
    %cst_57 = arith.constant 0.000000e+00 : f32
    %112 = vector.broadcast %cst_57 : f32 to vector<8x64xf32>
    %113 = arith.maximumf %111, %112 : vector<8x64xf32>
    %114 = arith.truncf %113 : vector<8x64xf32> to vector<8x64xbf16>
    %c0_58 = arith.constant 0 : index
    %c0_59 = arith.constant 0 : index
    %115 = vector.load %arg10[%c0_58, %c0_59] : memref<64x32xbf16, #tpu.memory_space<vmem>>, vector<64x32xbf16>
    %cst_60 = arith.constant dense<0.000000e+00> : vector<8x32xf32>
    %116 = tpu.matmul %114, %115, %cst_60 {dimension_numbers = #tpu.dot_dimension_numbers<[1], [0], [0], [1], [0, 0, 1, 1], [], []>} : vector<8x64xbf16>, vector<64x32xbf16>, vector<8x32xf32> -> vector<8x32xf32>
    %c0_61 = arith.constant 0 : index
    %c0_62 = arith.constant 0 : index
    %117 = vector.load %arg11[%c0_61, %c0_62] : memref<1x32xf32, #tpu.memory_space<vmem>>, vector<1x32xf32>
    %118 = vector.broadcast %117 : vector<1x32xf32> to vector<8x32xf32>
    %119 = arith.addf %116, %118 : vector<8x32xf32>
    %120 = arith.addf %119, %7 : vector<8x32xf32>
    %c0_63 = arith.constant 0 : index
    %c0_64 = arith.constant 0 : index
    %121 = vector.load %arg12[%c0_63, %c0_64] : memref<1x32xf32, #tpu.memory_space<vmem>>, vector<1x32xf32>
    %c0_65 = arith.constant 0 : index
    %c0_66 = arith.constant 0 : index
    %122 = vector.load %arg13[%c0_65, %c0_66] : memref<1x32xf32, #tpu.memory_space<vmem>>, vector<1x32xf32>
    %cst_67 = arith.constant dense<0.000000e+00> : vector<8xf32>
    %123 = vector.multi_reduction <add>, %120, %cst_67 [1] : vector<8x32xf32> to vector<8xf32>
    %124 = vector.shape_cast %123 : vector<8xf32> to vector<8x1xf32>
    %cst_68 = arith.constant 3.200000e+01 : f32
    %125 = vector.broadcast %cst_68 : f32 to vector<8x1xf32>
    %126 = arith.divf %124, %125 : vector<8x1xf32>
    %127 = vector.broadcast %126 : vector<8x1xf32> to vector<8x32xf32>
    %128 = arith.subf %120, %127 : vector<8x32xf32>
    %129 = arith.mulf %128, %128 : vector<8x32xf32>
    %cst_69 = arith.constant dense<0.000000e+00> : vector<8xf32>
    %130 = vector.multi_reduction <add>, %129, %cst_69 [1] : vector<8x32xf32> to vector<8xf32>
    %131 = vector.shape_cast %130 : vector<8xf32> to vector<8x1xf32>
    %cst_70 = arith.constant 3.200000e+01 : f32
    %132 = vector.broadcast %cst_70 : f32 to vector<8x1xf32>
    %133 = arith.divf %131, %132 : vector<8x1xf32>
    %134 = vector.broadcast %126 : vector<8x1xf32> to vector<8x32xf32>
    %135 = arith.subf %120, %134 : vector<8x32xf32>
    %cst_71 = arith.constant 9.99999974E-6 : f32
    %136 = vector.broadcast %cst_71 : f32 to vector<8x1xf32>
    %137 = arith.addf %133, %136 : vector<8x1xf32>
    %138 = math.rsqrt %137 : vector<8x1xf32>
    %139 = vector.broadcast %138 : vector<8x1xf32> to vector<8x32xf32>
    %140 = arith.mulf %135, %139 : vector<8x32xf32>
    %141 = vector.broadcast %121 : vector<1x32xf32> to vector<8x32xf32>
    %142 = arith.mulf %140, %141 : vector<8x32xf32>
    %143 = vector.broadcast %122 : vector<1x32xf32> to vector<8x32xf32>
    %144 = arith.addf %142, %143 : vector<8x32xf32>
    %145 = arith.truncf %144 : vector<8x32xf32> to vector<8x32xbf16>
    %c0_72 = arith.constant 0 : index
    %c0_73 = arith.constant 0 : index
    %146 = vector.load %arg14[%c0_72, %c0_73] : memref<32x64xbf16, #tpu.memory_space<vmem>>, vector<32x64xbf16>
    %cst_74 = arith.constant dense<0.000000e+00> : vector<8x64xf32>
    %147 = tpu.matmul %145, %146, %cst_74 {dimension_numbers = #tpu.dot_dimension_numbers<[1], [0], [0], [1], [0, 0, 1, 1], [], []>} : vector<8x32xbf16>, vector<32x64xbf16>, vector<8x64xf32> -> vector<8x64xf32>
    %c0_75 = arith.constant 0 : index
    %c0_76 = arith.constant 0 : index
    %148 = vector.load %arg15[%c0_75, %c0_76] : memref<1x64xf32, #tpu.memory_space<vmem>>, vector<1x64xf32>
    %149 = vector.broadcast %148 : vector<1x64xf32> to vector<8x64xf32>
    %150 = arith.addf %147, %149 : vector<8x64xf32>
    %cst_77 = arith.constant 0.000000e+00 : f32
    %151 = vector.broadcast %cst_77 : f32 to vector<8x64xf32>
    %152 = arith.maximumf %150, %151 : vector<8x64xf32>
    %153 = arith.truncf %152 : vector<8x64xf32> to vector<8x64xbf16>
    %c0_78 = arith.constant 0 : index
    %c0_79 = arith.constant 0 : index
    %154 = vector.load %arg16[%c0_78, %c0_79] : memref<64x32xbf16, #tpu.memory_space<vmem>>, vector<64x32xbf16>
    %cst_80 = arith.constant dense<0.000000e+00> : vector<8x32xf32>
    %155 = tpu.matmul %153, %154, %cst_80 {dimension_numbers = #tpu.dot_dimension_numbers<[1], [0], [0], [1], [0, 0, 1, 1], [], []>} : vector<8x64xbf16>, vector<64x32xbf16>, vector<8x32xf32> -> vector<8x32xf32>
    %c0_81 = arith.constant 0 : index
    %c0_82 = arith.constant 0 : index
    %156 = vector.load %arg17[%c0_81, %c0_82] : memref<1x32xf32, #tpu.memory_space<vmem>>, vector<1x32xf32>
    %157 = vector.broadcast %156 : vector<1x32xf32> to vector<8x32xf32>
    %158 = arith.addf %155, %157 : vector<8x32xf32>
    %159 = arith.addf %144, %158 : vector<8x32xf32>
    %c0_83 = arith.constant 0 : index
    %c0_84 = arith.constant 0 : index
    %160 = vector.load %arg18[%c0_83, %c0_84] : memref<1x32xf32, #tpu.memory_space<vmem>>, vector<1x32xf32>
    %c0_85 = arith.constant 0 : index
    %c0_86 = arith.constant 0 : index
    %161 = vector.load %arg19[%c0_85, %c0_86] : memref<1x32xf32, #tpu.memory_space<vmem>>, vector<1x32xf32>
    %cst_87 = arith.constant dense<0.000000e+00> : vector<8xf32>
    %162 = vector.multi_reduction <add>, %159, %cst_87 [1] : vector<8x32xf32> to vector<8xf32>
    %163 = vector.shape_cast %162 : vector<8xf32> to vector<8x1xf32>
    %cst_88 = arith.constant 3.200000e+01 : f32
    %164 = vector.broadcast %cst_88 : f32 to vector<8x1xf32>
    %165 = arith.divf %163, %164 : vector<8x1xf32>
    %166 = vector.broadcast %165 : vector<8x1xf32> to vector<8x32xf32>
    %167 = arith.subf %159, %166 : vector<8x32xf32>
    %168 = arith.mulf %167, %167 : vector<8x32xf32>
    %cst_89 = arith.constant dense<0.000000e+00> : vector<8xf32>
    %169 = vector.multi_reduction <add>, %168, %cst_89 [1] : vector<8x32xf32> to vector<8xf32>
    %170 = vector.shape_cast %169 : vector<8xf32> to vector<8x1xf32>
    %cst_90 = arith.constant 3.200000e+01 : f32
    %171 = vector.broadcast %cst_90 : f32 to vector<8x1xf32>
    %172 = arith.divf %170, %171 : vector<8x1xf32>
    %173 = vector.broadcast %165 : vector<8x1xf32> to vector<8x32xf32>
    %174 = arith.subf %159, %173 : vector<8x32xf32>
    %cst_91 = arith.constant 9.99999974E-6 : f32
    %175 = vector.broadcast %cst_91 : f32 to vector<8x1xf32>
    %176 = arith.addf %172, %175 : vector<8x1xf32>
    %177 = math.rsqrt %176 : vector<8x1xf32>
    %178 = vector.broadcast %177 : vector<8x1xf32> to vector<8x32xf32>
    %179 = arith.mulf %174, %178 : vector<8x32xf32>
    %180 = vector.broadcast %160 : vector<1x32xf32> to vector<8x32xf32>
    %181 = arith.mulf %179, %180 : vector<8x32xf32>
    %182 = vector.broadcast %161 : vector<1x32xf32> to vector<8x32xf32>
    %183 = arith.addf %181, %182 : vector<8x32xf32>
    %c0_92 = arith.constant 0 : index
    %c0_93 = arith.constant 0 : index
    %c0_94 = arith.constant 0 : index
    %184 = vector.load %arg20[%c0_92, %c0_93, %c0_94] : memref<1x8x32xf32, #tpu.memory_space<vmem>>, vector<1x8x32xf32>
    %185 = vector.shape_cast %184 : vector<1x8x32xf32> to vector<8x32xf32>
    %186 = vector.shape_cast %183 : vector<8x32xf32> to vector<1x8x32xf32>
    tpu.vector_store %arg20[%c0_92, %c0_93, %c0_94], %186 {strides = array<i32>} : memref<1x8x32xf32, #tpu.memory_space<vmem>>, vector<1x8x32xf32>,
    return
  }
  func.func @transform_0(%arg0: i32, %arg1: i32) -> (i32, i32, i32) {
    %c0_i32 = arith.constant 0 : i32
    %c0_i32_0 = arith.constant 0 : i32
    %c0_i32_1 = arith.constant 0 : i32
    return %arg0, %c0_i32, %c0_i32_0 : i32, i32, i32
  }
  func.func @transform_1(%arg0: i32, %arg1: i32) -> (i32, i32, i32) {
    %c0_i32 = arith.constant 0 : i32
    %c0_i32_0 = arith.constant 0 : i32
    %c0_i32_1 = arith.constant 0 : i32
    return %arg0, %c0_i32, %c0_i32_0 : i32, i32, i32
  }
  func.func @transform_2(%arg0: i32, %arg1: i32) -> (i32, i32) {
    %c0_i32 = arith.constant 0 : i32
    %c0_i32_0 = arith.constant 0 : i32
    %c0_i32_1 = arith.constant 0 : i32
    return %c0_i32, %c0_i32_0 : i32, i32
  }
  func.func @transform_3(%arg0: i32, %arg1: i32) -> (i32, i32) {
    %c0_i32 = arith.constant 0 : i32
    %c0_i32_0 = arith.constant 0 : i32
    %c0_i32_1 = arith.constant 0 : i32
    return %c0_i32, %c0_i32_0 : i32, i32
  }
  func.func @transform_4(%arg0: i32, %arg1: i32) -> (i32, i32) {
    %c0_i32 = arith.constant 0 : i32
    %c0_i32_0 = arith.constant 0 : i32
    %c0_i32_1 = arith.constant 0 : i32
    return %c0_i32, %c0_i32_0 : i32, i32
  }
  func.func @transform_5(%arg0: i32, %arg1: i32) -> (i32, i32) {
    %c0_i32 = arith.constant 0 : i32
    %c0_i32_0 = arith.constant 0 : i32
    %c0_i32_1 = arith.constant 0 : i32
    return %c0_i32, %c0_i32_0 : i32, i32
  }
  func.func @transform_6(%arg0: i32, %arg1: i32) -> (i32, i32) {
    %c0_i32 = arith.constant 0 : i32
    %c0_i32_0 = arith.constant 0 : i32
    %c0_i32_1 = arith.constant 0 : i32
    return %c0_i32, %c0_i32_0 : i32, i32
  }
  func.func @transform_7(%arg0: i32, %arg1: i32) -> (i32, i32) {
    %c0_i32 = arith.constant 0 : i32
    %c0_i32_0 = arith.constant 0 : i32
    %c0_i32_1 = arith.constant 0 : i32
    return %c0_i32, %c0_i32_0 : i32, i32
  }
  func.func @transform_8(%arg0: i32, %arg1: i32) -> (i32, i32) {
    %c0_i32 = arith.constant 0 : i32
    %c0_i32_0 = arith.constant 0 : i32
    %c0_i32_1 = arith.constant 0 : i32
    return %c0_i32, %c0_i32_0 : i32, i32
  }
  func.func @transform_9(%arg0: i32, %arg1: i32) -> (i32, i32) {
    %c0_i32 = arith.constant 0 : i32
    %c0_i32_0 = arith.constant 0 : i32
    %c0_i32_1 = arith.constant 0 : i32
    return %c0_i32, %c0_i32_0 : i32, i32
  }
  func.func @transform_10(%arg0: i32, %arg1: i32) -> (i32, i32) {
    %c0_i32 = arith.constant 0 : i32
    %c0_i32_0 = arith.constant 0 : i32
    %c0_i32_1 = arith.constant 0 : i32
    return %c0_i32, %c0_i32_0 : i32, i32
  }
  func.func @transform_11(%arg0: i32, %arg1: i32) -> (i32, i32) {
    %c0_i32 = arith.constant 0 : i32
    %c0_i32_0 = arith.constant 0 : i32
    %c0_i32_1 = arith.constant 0 : i32
    return %c0_i32, %c0_i32_0 : i32, i32
  }
  func.func @transform_12(%arg0: i32, %arg1: i32) -> (i32, i32) {
    %c0_i32 = arith.constant 0 : i32
    %c0_i32_0 = arith.constant 0 : i32
    %c0_i32_1 = arith.constant 0 : i32
    return %c0_i32, %c0_i32_0 : i32, i32
  }
  func.func @transform_13(%arg0: i32, %arg1: i32) -> (i32, i32) {
    %c0_i32 = arith.constant 0 : i32
    %c0_i32_0 = arith.constant 0 : i32
    %c0_i32_1 = arith.constant 0 : i32
    return %c0_i32, %c0_i32_0 : i32, i32
  }
  func.func @transform_14(%arg0: i32, %arg1: i32) -> (i32, i32) {
    %c0_i32 = arith.constant 0 : i32
    %c0_i32_0 = arith.constant 0 : i32
    %c0_i32_1 = arith.constant 0 : i32
    return %c0_i32, %c0_i32_0 : i32, i32
  }
  func.func @transform_15(%arg0: i32, %arg1: i32) -> (i32, i32) {
    %c0_i32 = arith.constant 0 : i32
    %c0_i32_0 = arith.constant 0 : i32
    %c0_i32_1 = arith.constant 0 : i32
    return %c0_i32, %c0_i32_0 : i32, i32
  }
  func.func @transform_16(%arg0: i32, %arg1: i32) -> (i32, i32) {
    %c0_i32 = arith.constant 0 : i32
    %c0_i32_0 = arith.constant 0 : i32
    %c0_i32_1 = arith.constant 0 : i32
    return %c0_i32, %c0_i32_0 : i32, i32
  }
  func.func @transform_17(%arg0: i32, %arg1: i32) -> (i32, i32) {
    %c0_i32 = arith.constant 0 : i32
    %c0_i32_0 = arith.constant 0 : i32
    %c0_i32_1 = arith.constant 0 : i32
    return %c0_i32, %c0_i32_0 : i32, i32
  }
  func.func @transform_18(%arg0: i32, %arg1: i32) -> (i32, i32, i32) {
    %c0_i32 = arith.constant 0 : i32
    %c0_i32_0 = arith.constant 0 : i32
    return %arg0, %arg1, %c0_i32 : i32, i32, i32
  }
}

</mosaic_0001>

<llo_original>
// kernel: tpu_custom_call.1
$region0: #{tpu_custom_call.1}
  #allocation0 [shape = 'u32[]', space=smem, size = 0x4, offset = 0x4, fixed_abs, tag = 'smem constant byte address 0x4 - core index']
  #allocation1 [shape = 'u32[144,128]{1,0:T(1,128)}', space=vmem, size = 0x12000, scoped, tag = 'internal scratch']
  #allocation2 [shape = 'bf16[4,8,8]{2,1,0:T(8,128)(2,1)}', space=vmem, size = 0x2000, scoped, tag = 'scratch operand']
  #allocation3 [shape = 'bf16[4,8,8]{2,1,0:T(8,128)(2,1)}', space=vmem, size = 0x2000, scoped, tag = 'scratch operand']
  %s0 = inlined_call_operand.vmem [shape: f32[2,8,32], index: 0, kind: input, shape index: {}]
  %s1 = inlined_call_operand.hbm [shape: f32[2,1,8], index: 1, kind: input, shape index: {}]
  %s2 = inlined_call_operand.vmem [shape: bf16[32,32], index: 2, kind: input, shape index: {}]
  %s3 = inlined_call_operand.vmem [shape: bf16[32,64], index: 3, kind: input, shape index: {}]
  %s4 = inlined_call_operand.vmem [shape: bf16[32,32], index: 4, kind: input, shape index: {}]
  %s5 = inlined_call_operand.hbm [shape: f32[1,32], index: 5, kind: input, shape index: {}]
  %s6 = inlined_call_operand.vmem [shape: bf16[32,64], index: 6, kind: input, shape index: {}]
  %s7 = inlined_call_operand.hbm [shape: f32[1,64], index: 7, kind: input, shape index: {}]
  %s8 = inlined_call_operand.vmem [shape: bf16[64,32], index: 8, kind: input, shape index: {}]
  %s9 = inlined_call_operand.hbm [shape: f32[1,32], index: 9, kind: input, shape index: {}]
  %s10 = inlined_call_operand.vmem [shape: f32[1,32], index: 10, kind: input, shape index: {}]
  %s11 = inlined_call_operand.vmem [shape: f32[1,32], index: 11, kind: input, shape index: {}]
  %s12 = inlined_call_operand.vmem [shape: bf16[32,64], index: 12, kind: input, shape index: {}]
  %s13 = inlined_call_operand.vmem [shape: f32[1,64], index: 13, kind: input, shape index: {}]
  %s14 = inlined_call_operand.vmem [shape: bf16[64,32], index: 14, kind: input, shape index: {}]
  %s15 = inlined_call_operand.vmem [shape: f32[1,32], index: 15, kind: input, shape index: {}]
  %s16 = inlined_call_operand.vmem [shape: f32[1,32], index: 16, kind: input, shape index: {}]
  %s17 = inlined_call_operand.vmem [shape: f32[1,32], index: 17, kind: input, shape index: {}]
  %s18 = inlined_call_operand.hbm [shape: f32[2,8,32], index: 18, kind: output, shape index: {}]
  %s19 = sld [smem:[#allocation0]]
  $region125: #{tpu_custom_call.1} parent=0
    _
  %s21 = ssub.s32 1, %s19
  %s22 = scalar_select 0, %s21, %s19
  $region1: #{tpu_custom_call.1} parent=0
    #allocation4 [shape = 'u8[1024]{0}', space=vmem, size = 0x400, scoped, tag = 'input window, operand 1']
    #allocation5 [shape = 's32[2]{0}', space=sflag, size = 0x8, scoped, tag = 'scoped memory for tpu_custom_call.1']
    #allocation6 [shape = 's32[2]{0}', space=sflag, size = 0x8, scoped, tag = 'scoped memory for tpu_custom_call.1']
    #allocation7 [shape = 'u8[512]{0}', space=vmem, size = 0x400, scoped, tag = 'input window, operand 5, single buffered']
    #allocation8 [shape = 's32[1]{0}', space=sflag, size = 0x4, scoped, tag = 'scoped memory for tpu_custom_call.1']
    #allocation9 [shape = 'u8[512]{0}', space=vmem, size = 0x400, scoped, tag = 'input window, operand 7, single buffered']
    #allocation10 [shape = 'u8[512]{0}', space=vmem, size = 0x400, scoped, tag = 'input window, operand 9, single buffered']
    #allocation11 [shape = 's32[1]{0}', space=sflag, size = 0x4, scoped, tag = 'scoped memory for tpu_custom_call.1']
    #allocation12 [shape = 'u8[8192]{0}', space=vmem, size = 0x2000, scoped, tag = 'output window, operand 0']
    %23 = vsyncpa [#allocation5], 0
    %s24 = scalar_lea.sflag [#allocation5], 1
    %25 = vsyncpa %s24, 0
    %26 = vsyncpa [#allocation8], 0
    %27 = vsyncpa [#allocation11], 0
    %28 = vsyncpa [#allocation6], 0
    %s29 = scalar_lea.sflag [#allocation6], 1
    %30 = vsyncpa %s29, 0
    loop: start=0, step=1, limit=4
    $region2: #{tpu_custom_call.1} parent=1 // loop_pre_header
      _
    $region3: #{tpu_custom_call.1} parent=1 // loop_header
      %s32 = sphi 0, %s36
      %p33 = scmp.ge.s32.totalorder %s32, 4
      %s39 = sphi 0, %s51
      %s40 = sphi 0, %s47
      %s41 = sphi 0, %s39
      %s42 = sphi 0, %s40
      %s43 = sphi 0, %s41
      %s44 = sphi 0, %s42
      %s54 = sphi 0, %s56
      %s57 = sphi 0, %s54
      %s58 = sphi 0, %s57
      %s74 = sphi 0, %s58
      %s80 = sphi 0, %s82
      %s83 = sphi 0, %s80
      %s84 = sphi 0, %s83
      %s100 = sphi 0, %s84
      %s104 = sphi 0, %s104
      %s106 = sphi 0, %s104
      %s107 = sphi 0, %s106
      %s121 = sphi 0, %s107
      %s125 = sphi 0, %s125
      %s127 = sphi 0, %s125
      %s128 = sphi 0, %s127
      %s142 = sphi 0, %s128
      %s146 = sphi 0, %s146
      %s148 = sphi 0, %s146
      %s149 = sphi 0, %s148
      %s163 = sphi 0, %s149
      %s167 = sphi 0, %s167
      %s169 = sphi 0, %s167
      %s170 = sphi 0, %s169
      %s184 = sphi 0, %s170
      %s188 = sphi 0, %s188
      %s190 = sphi 0, %s188
      %s191 = sphi 0, %s190
      %s205 = sphi 0, %s191
      %s209 = sphi 0, %s209
      %s211 = sphi 0, %s209
      %s212 = sphi 0, %s211
      %s226 = sphi 0, %s212
      %s230 = sphi 0, %s230
      %s232 = sphi 0, %s230
      %s233 = sphi 0, %s232
      %s247 = sphi 0, %s233
      %s251 = sphi 0, %s251
      %s253 = sphi 0, %s251
      %s254 = sphi 0, %s253
      %s268 = sphi 0, %s254
      %s272 = sphi 0, %s272
      %s274 = sphi 0, %s272
      %s275 = sphi 0, %s274
      %s289 = sphi 0, %s275
      %s293 = sphi 0, %s293
      %s295 = sphi 0, %s293
      %s296 = sphi 0, %s295
      %s310 = sphi 0, %s296
      %s314 = sphi 0, %s314
      %s316 = sphi 0, %s314
      %s317 = sphi 0, %s316
      %s331 = sphi 0, %s317
      %s335 = sphi 0, %s335
      %s337 = sphi 0, %s335
      %s338 = sphi 0, %s337
      %s352 = sphi 0, %s338
      %s356 = sphi 0, %s356
      %s358 = sphi 0, %s356
      %s359 = sphi 0, %s358
      %s373 = sphi 0, %s359
      %s377 = sphi 0, %s377
      %s379 = sphi 0, %s377
      %s380 = sphi 0, %s379
      %s394 = sphi 0, %s380
      %s398 = sphi 0, %s398
      %s400 = sphi 0, %s398
      %s401 = sphi 0, %s400
      %s415 = sphi 0, %s401
      %s419 = sphi 0, %s419
      %s421 = sphi 0, %s419
      %s422 = sphi 0, %s421
      %s436 = sphi 0, %s422
      %s444 = sphi 0, %s446
      %s447 = sphi 0, %s444
      %s448 = sphi 0, %s447
      %s464 = sphi 0, %s448
    $region4: #{tpu_custom_call.1} parent=1 // loop_header_branch
      %35 = sbr.rel (%p33) target = $region8
    $region5: #{tpu_custom_call.1} parent=1 // loop_body
      %s37 = ssub.s32 %s32, 1
      %s38 = ssub.s32 %s32, 2
      %s45 = sadd.s32 1, %s40
      %p46 = scmp.ge.s32.totalorder %s45, 1
      %s47 = scalar_select %p46, 0, %s45
      %s48 = sadd.s32 1, %s39
      %s49 = scalar_select %p46, %s48, %s39
      %p50 = scmp.ge.s32.totalorder %s49, 2
      %s51 = scalar_select %p50, 0, %s49
      %s52 = ssub.s32 %s39, %s51
      %p53 = scmp.eq.s32.totalorder %s52, 0
      %s55 = sadd.s32 %s54, 1
      %s56 = scalar_select %p53, %s54, %s55
      %p59 = pneg %p53
      %p60 = scmp.eq.s32.totalorder %s32, 1
      %p61 = por %p59, %p60
      %p62 = scmp.ne.s32.totalorder %s54, %s57
      %p63 = scmp.eq.s32.totalorder %s32, 0
      %p64 = por %p62, %p63
      %p65 = scmp.ne.s32.totalorder %s54, %s57
      %p66 = scmp.eq.s32.totalorder %s37, 1
      %p67 = por %p65, %p66
      %p68 = scmp.ne.s32.totalorder %s57, %s58
      %p69 = scmp.eq.s32.totalorder %s37, 0
      %p70 = por %p68, %p69
      %p71 = scmp.ne.s32.totalorder %s57, %s58
      %p72 = scmp.eq.s32.totalorder %s38, 1
      %p73 = por %p71, %p72
      %p75 = scmp.ne.s32.totalorder %s58, %s74
      %p76 = scmp.eq.s32.totalorder %s38, 0
      %p77 = por %p75, %p76
      %s78 = ssub.s32 %s39, %s51
      %p79 = scmp.eq.s32.totalorder %s78, 0
      %s81 = sadd.s32 %s80, 1
      %s82 = scalar_select %p79, %s80, %s81
      %p85 = pneg %p79
      %p86 = scmp.eq.s32.totalorder %s32, 1
      %p87 = por %p85, %p86
      %p88 = scmp.ne.s32.totalorder %s80, %s83
      %p89 = scmp.eq.s32.totalorder %s32, 0
      %p90 = por %p88, %p89
      %p91 = scmp.ne.s32.totalorder %s80, %s83
      %p92 = scmp.eq.s32.totalorder %s37, 1
      %p93 = por %p91, %p92
      %p94 = scmp.ne.s32.totalorder %s83, %s84
      %p95 = scmp.eq.s32.totalorder %s37, 0
      %p96 = por %p94, %p95
      %p97 = scmp.ne.s32.totalorder %s83, %s84
      %p98 = scmp.eq.s32.totalorder %s38, 1
      %p99 = por %p97, %p98
      %p101 = scmp.ne.s32.totalorder %s84, %s100
      %p102 = scmp.eq.s32.totalorder %s38, 0
      %p103 = por %p101, %p102
      %s105 = sadd.s32 %s104, 1
      %p108 = scmp.eq.s32.totalorder %s32, 1
      %p109 = scmp.ne.s32.totalorder %s104, %s106
      %p110 = scmp.eq.s32.totalorder %s32, 0
      %p111 = por %p109, %p110
      %p112 = scmp.ne.s32.totalorder %s104, %s106
      %p113 = scmp.eq.s32.totalorder %s37, 1
      %p114 = por %p112, %p113
      %p115 = scmp.ne.s32.totalorder %s106, %s107
      %p116 = scmp.eq.s32.totalorder %s37, 0
      %p117 = por %p115, %p116
      %p118 = scmp.ne.s32.totalorder %s106, %s107
      %p119 = scmp.eq.s32.totalorder %s38, 1
      %p120 = por %p118, %p119
      %p122 = scmp.ne.s32.totalorder %s107, %s121
      %p123 = scmp.eq.s32.totalorder %s38, 0
      %p124 = por %p122, %p123
      %s126 = sadd.s32 %s125, 1
      %p129 = scmp.eq.s32.totalorder %s32, 1
      %p130 = scmp.ne.s32.totalorder %s125, %s127
      %p131 = scmp.eq.s32.totalorder %s32, 0
      %p132 = por %p130, %p131
      %p133 = scmp.ne.s32.totalorder %s125, %s127
      %p134 = scmp.eq.s32.totalorder %s37, 1
      %p135 = por %p133, %p134
      %p136 = scmp.ne.s32.totalorder %s127, %s128
      %p137 = scmp.eq.s32.totalorder %s37, 0
      %p138 = por %p136, %p137
      %p139 = scmp.ne.s32.totalorder %s127, %s128
      %p140 = scmp.eq.s32.totalorder %s38, 1
      %p141 = por %p139, %p140
      %p143 = scmp.ne.s32.totalorder %s128, %s142
      %p144 = scmp.eq.s32.totalorder %s38, 0
      %p145 = por %p143, %p144
      %s147 = sadd.s32 %s146, 1
      %p150 = scmp.eq.s32.totalorder %s32, 1
      %p151 = scmp.ne.s32.totalorder %s146, %s148
      %p152 = scmp.eq.s32.totalorder %s32, 0
      %p153 = por %p151, %p152
      %p154 = scmp.ne.s32.totalorder %s146, %s148
      %p155 = scmp.eq.s32.totalorder %s37, 1
      %p156 = por %p154, %p155
      %p157 = scmp.ne.s32.totalorder %s148, %s149
      %p158 = scmp.eq.s32.totalorder %s37, 0
      %p159 = por %p157, %p158
      %p160 = scmp.ne.s32.totalorder %s148, %s149
      %p161 = scmp.eq.s32.totalorder %s38, 1
      %p162 = por %p160, %p161
      %p164 = scmp.ne.s32.totalorder %s149, %s163
      %p165 = scmp.eq.s32.totalorder %s38, 0
      %p166 = por %p164, %p165
      %s168 = sadd.s32 %s167, 1
      %p171 = scmp.eq.s32.totalorder %s32, 1
      %p172 = scmp.ne.s32.totalorder %s167, %s169
      %p173 = scmp.eq.s32.totalorder %s32, 0
      %p174 = por %p172, %p173
      %p175 = scmp.ne.s32.totalorder %s167, %s169
      %p176 = scmp.eq.s32.totalorder %s37, 1
      %p177 = por %p175, %p176
      %p178 = scmp.ne.s32.totalorder %s169, %s170
      %p179 = scmp.eq.s32.totalorder %s37, 0
      %p180 = por %p178, %p179
      %p181 = scmp.ne.s32.totalorder %s169, %s170
      %p182 = scmp.eq.s32.totalorder %s38, 1
      %p183 = por %p181, %p182
      %p185 = scmp.ne.s32.totalorder %s170, %s184
      %p186 = scmp.eq.s32.totalorder %s38, 0
      %p187 = por %p185, %p186
      %s189 = sadd.s32 %s188, 1
      %p192 = scmp.eq.s32.totalorder %s32, 1
      %p193 = scmp.ne.s32.totalorder %s188, %s190
      %p194 = scmp.eq.s32.totalorder %s32, 0
      %p195 = por %p193, %p194
      %p196 = scmp.ne.s32.totalorder %s188, %s190
      %p197 = scmp.eq.s32.totalorder %s37, 1
      %p198 = por %p196, %p197
      %p199 = scmp.ne.s32.totalorder %s190, %s191
      %p200 = scmp.eq.s32.totalorder %s37, 0
      %p201 = por %p199, %p200
      %p202 = scmp.ne.s32.totalorder %s190, %s191
      %p203 = scmp.eq.s32.totalorder %s38, 1
      %p204 = por %p202, %p203
      %p206 = scmp.ne.s32.totalorder %s191, %s205
      %p207 = scmp.eq.s32.totalorder %s38, 0
      %p208 = por %p206, %p207
      %s210 = sadd.s32 %s209, 1
      %p213 = scmp.eq.s32.totalorder %s32, 1
      %p214 = scmp.ne.s32.totalorder %s209, %s211
      %p215 = scmp.eq.s32.totalorder %s32, 0
      %p216 = por %p214, %p215
      %p217 = scmp.ne.s32.totalorder %s209, %s211
      %p218 = scmp.eq.s32.totalorder %s37, 1
      %p219 = por %p217, %p218
      %p220 = scmp.ne.s32.totalorder %s211, %s212
      %p221 = scmp.eq.s32.totalorder %s37, 0
      %p222 = por %p220, %p221
      %p223 = scmp.ne.s32.totalorder %s211, %s212
      %p224 = scmp.eq.s32.totalorder %s38, 1
      %p225 = por %p223, %p224
      %p227 = scmp.ne.s32.totalorder %s212, %s226
      %p228 = scmp.eq.s32.totalorder %s38, 0
      %p229 = por %p227, %p228
      %s231 = sadd.s32 %s230, 1
      %p234 = scmp.eq.s32.totalorder %s32, 1
      %p235 = scmp.ne.s32.totalorder %s230, %s232
      %p236 = scmp.eq.s32.totalorder %s32, 0
      %p237 = por %p235, %p236
      %p238 = scmp.ne.s32.totalorder %s230, %s232
      %p239 = scmp.eq.s32.totalorder %s37, 1
      %p240 = por %p238, %p239
      %p241 = scmp.ne.s32.totalorder %s232, %s233
      %p242 = scmp.eq.s32.totalorder %s37, 0
      %p243 = por %p241, %p242
      %p244 = scmp.ne.s32.totalorder %s232, %s233
      %p245 = scmp.eq.s32.totalorder %s38, 1
      %p246 = por %p244, %p245
      %p248 = scmp.ne.s32.totalorder %s233, %s247
      %p249 = scmp.eq.s32.totalorder %s38, 0
      %p250 = por %p248, %p249
      %s252 = sadd.s32 %s251, 1
      %p255 = scmp.eq.s32.totalorder %s32, 1
      %p256 = scmp.ne.s32.totalorder %s251, %s253
      %p257 = scmp.eq.s32.totalorder %s32, 0
      %p258 = por %p256, %p257
      %p259 = scmp.ne.s32.totalorder %s251, %s253
      %p260 = scmp.eq.s32.totalorder %s37, 1
      %p261 = por %p259, %p260
      %p262 = scmp.ne.s32.totalorder %s253, %s254
      %p263 = scmp.eq.s32.totalorder %s37, 0
      %p264 = por %p262, %p263
      %p265 = scmp.ne.s32.totalorder %s253, %s254
      %p266 = scmp.eq.s32.totalorder %s38, 1
      %p267 = por %p265, %p266
      %p269 = scmp.ne.s32.totalorder %s254, %s268
      %p270 = scmp.eq.s32.totalorder %s38, 0
      %p271 = por %p269, %p270
      %s273 = sadd.s32 %s272, 1
      %p276 = scmp.eq.s32.totalorder %s32, 1
      %p277 = scmp.ne.s32.totalorder %s272, %s274
      %p278 = scmp.eq.s32.totalorder %s32, 0
      %p279 = por %p277, %p278
      %p280 = scmp.ne.s32.totalorder %s272, %s274
      %p281 = scmp.eq.s32.totalorder %s37, 1
      %p282 = por %p280, %p281
      %p283 = scmp.ne.s32.totalorder %s274, %s275
      %p284 = scmp.eq.s32.totalorder %s37, 0
      %p285 = por %p283, %p284
      %p286 = scmp.ne.s32.totalorder %s274, %s275
      %p287 = scmp.eq.s32.totalorder %s38, 1
      %p288 = por %p286, %p287
      %p290 = scmp.ne.s32.totalorder %s275, %s289
      %p291 = scmp.eq.s32.totalorder %s38, 0
      %p292 = por %p290, %p291
      %s294 = sadd.s32 %s293, 1
      %p297 = scmp.eq.s32.totalorder %s32, 1
      %p298 = scmp.ne.s32.totalorder %s293, %s295
      %p299 = scmp.eq.s32.totalorder %s32, 0
      %p300 = por %p298, %p299
      %p301 = scmp.ne.s32.totalorder %s293, %s295
      %p302 = scmp.eq.s32.totalorder %s37, 1
      %p303 = por %p301, %p302
      %p304 = scmp.ne.s32.totalorder %s295, %s296
      %p305 = scmp.eq.s32.totalorder %s37, 0
      %p306 = por %p304, %p305
      %p307 = scmp.ne.s32.totalorder %s295, %s296
      %p308 = scmp.eq.s32.totalorder %s38, 1
      %p309 = por %p307, %p308
      %p311 = scmp.ne.s32.totalorder %s296, %s310
      %p312 = scmp.eq.s32.totalorder %s38, 0
      %p313 = por %p311, %p312
      %s315 = sadd.s32 %s314, 1
      %p318 = scmp.eq.s32.totalorder %s32, 1
      %p319 = scmp.ne.s32.totalorder %s314, %s316
      %p320 = scmp.eq.s32.totalorder %s32, 0
      %p321 = por %p319, %p320
      %p322 = scmp.ne.s32.totalorder %s314, %s316
      %p323 = scmp.eq.s32.totalorder %s37, 1
      %p324 = por %p322, %p323
      %p325 = scmp.ne.s32.totalorder %s316, %s317
      %p326 = scmp.eq.s32.totalorder %s37, 0
      %p327 = por %p325, %p326
      %p328 = scmp.ne.s32.totalorder %s316, %s317
      %p329 = scmp.eq.s32.totalorder %s38, 1
      %p330 = por %p328, %p329
      %p332 = scmp.ne.s32.totalorder %s317, %s331
      %p333 = scmp.eq.s32.totalorder %s38, 0
      %p334 = por %p332, %p333
      %s336 = sadd.s32 %s335, 1
      %p339 = scmp.eq.s32.totalorder %s32, 1
      %p340 = scmp.ne.s32.totalorder %s335, %s337
      %p341 = scmp.eq.s32.totalorder %s32, 0
      %p342 = por %p340, %p341
      %p343 = scmp.ne.s32.totalorder %s335, %s337
      %p344 = scmp.eq.s32.totalorder %s37, 1
      %p345 = por %p343, %p344
      %p346 = scmp.ne.s32.totalorder %s337, %s338
      %p347 = scmp.eq.s32.totalorder %s37, 0
      %p348 = por %p346, %p347
      %p349 = scmp.ne.s32.totalorder %s337, %s338
      %p350 = scmp.eq.s32.totalorder %s38, 1
      %p351 = por %p349, %p350
      %p353 = scmp.ne.s32.totalorder %s338, %s352
      %p354 = scmp.eq.s32.totalorder %s38, 0
      %p355 = por %p353, %p354
      %s357 = sadd.s32 %s356, 1
      %p360 = scmp.eq.s32.totalorder %s32, 1
      %p361 = scmp.ne.s32.totalorder %s356, %s358
      %p362 = scmp.eq.s32.totalorder %s32, 0
      %p363 = por %p361, %p362
      %p364 = scmp.ne.s32.totalorder %s356, %s358
      %p365 = scmp.eq.s32.totalorder %s37, 1
      %p366 = por %p364, %p365
      %p367 = scmp.ne.s32.totalorder %s358, %s359
      %p368 = scmp.eq.s32.totalorder %s37, 0
      %p369 = por %p367, %p368
      %p370 = scmp.ne.s32.totalorder %s358, %s359
      %p371 = scmp.eq.s32.totalorder %s38, 1
      %p372 = por %p370, %p371
      %p374 = scmp.ne.s32.totalorder %s359, %s373
      %p375 = scmp.eq.s32.totalorder %s38, 0
      %p376 = por %p374, %p375
      %s378 = sadd.s32 %s377, 1
      %p381 = scmp.eq.s32.totalorder %s32, 1
      %p382 = scmp.ne.s32.totalorder %s377, %s379
      %p383 = scmp.eq.s32.totalorder %s32, 0
      %p384 = por %p382, %p383
      %p385 = scmp.ne.s32.totalorder %s377, %s379
      %p386 = scmp.eq.s32.totalorder %s37, 1
      %p387 = por %p385, %p386
      %p388 = scmp.ne.s32.totalorder %s379, %s380
      %p389 = scmp.eq.s32.totalorder %s37, 0
      %p390 = por %p388, %p389
      %p391 = scmp.ne.s32.totalorder %s379, %s380
      %p392 = scmp.eq.s32.totalorder %s38, 1
      %p393 = por %p391, %p392
      %p395 = scmp.ne.s32.totalorder %s380, %s394
      %p396 = scmp.eq.s32.totalorder %s38, 0
      %p397 = por %p395, %p396
      %s399 = sadd.s32 %s398, 1
      %p402 = scmp.eq.s32.totalorder %s32, 1
      %p403 = scmp.ne.s32.totalorder %s398, %s400
      %p404 = scmp.eq.s32.totalorder %s32, 0
      %p405 = por %p403, %p404
      %p406 = scmp.ne.s32.totalorder %s398, %s400
      %p407 = scmp.eq.s32.totalorder %s37, 1
      %p408 = por %p406, %p407
      %p409 = scmp.ne.s32.totalorder %s400, %s401
      %p410 = scmp.eq.s32.totalorder %s37, 0
      %p411 = por %p409, %p410
      %p412 = scmp.ne.s32.totalorder %s400, %s401
      %p413 = scmp.eq.s32.totalorder %s38, 1
      %p414 = por %p412, %p413
      %p416 = scmp.ne.s32.totalorder %s401, %s415
      %p417 = scmp.eq.s32.totalorder %s38, 0
      %p418 = por %p416, %p417
      %s420 = sadd.s32 %s419, 1
      %p423 = scmp.eq.s32.totalorder %s32, 1
      %p424 = scmp.ne.s32.totalorder %s419, %s421
      %p425 = scmp.eq.s32.totalorder %s32, 0
      %p426 = por %p424, %p425
      %p427 = scmp.ne.s32.totalorder %s419, %s421
      %p428 = scmp.eq.s32.totalorder %s37, 1
      %p429 = por %p427, %p428
      %p430 = scmp.ne.s32.totalorder %s421, %s422
      %p431 = scmp.eq.s32.totalorder %s37, 0
      %p432 = por %p430, %p431
      %p433 = scmp.ne.s32.totalorder %s421, %s422
      %p434 = scmp.eq.s32.totalorder %s38, 1
      %p435 = por %p433, %p434
      %p437 = scmp.ne.s32.totalorder %s422, %s436
      %p438 = scmp.eq.s32.totalorder %s38, 0
      %p439 = por %p437, %p438
      %s440 = ssub.s32 %s39, %s51
      %s441 = ssub.s32 %s40, %s47
      %s442 = sor.u32 %s440, %s441
      %p443 = scmp.eq.s32.totalorder %s442, 0
      %s445 = sadd.s32 %s444, 1
      %s446 = scalar_select %p443, %s444, %s445
      %p449 = pneg %p443
      %p450 = scmp.eq.s32.totalorder %s32, 1
      %p451 = por %p449, %p450
      %p452 = scmp.ne.s32.totalorder %s444, %s447
      %p453 = scmp.eq.s32.totalorder %s32, 0
      %p454 = por %p452, %p453
      %p455 = scmp.ne.s32.totalorder %s444, %s447
      %p456 = scmp.eq.s32.totalorder %s37, 1
      %p457 = por %p455, %p456
      %p458 = scmp.ne.s32.totalorder %s447, %s448
      %p459 = scmp.eq.s32.totalorder %s37, 0
      %p460 = por %p458, %p459
      %p461 = scmp.ne.s32.totalorder %s447, %s448
      %p462 = scmp.eq.s32.totalorder %s38, 1
      %p463 = por %p461, %p462
      %p465 = scmp.ne.s32.totalorder %s448, %s464
      %p466 = scmp.eq.s32.totalorder %s38, 0
      %p467 = por %p465, %p466
      %p468 = scmp.le.s32.totalorder 1, %s32
      %p469 = scmp.lt.s32.totalorder %s32, 3
      %p470 = pnand %p468, %p469
      %p471 = pneg %p470
      // Predicated region
      $region9: #{tpu_custom_call.1} parent=5 // pred_check
        _
      $region10: #{tpu_custom_call.1} parent=5 // pred_check_branch
        %473 = sbr.rel (%p470) target = $region12
      $region11: #{tpu_custom_call.1} parent=5 // pred_region
        %s474 = ssub.s32 %s32, 1
        // Predicated region
        $region13: #{tpu_custom_call.1} parent=11 // pred_check
          %p475 = pneg %p117
        $region14: #{tpu_custom_call.1} parent=11 // pred_check_branch
          %477 = sbr.rel (%p475) target = $region16
        $region15: #{tpu_custom_call.1} parent=11 // pred_region
          _
        $region16: #{tpu_custom_call.1} parent=11 // pred_fallthru
          _
        // Predicated region
        $region17: #{tpu_custom_call.1} parent=11 // pred_check
          %p478 = pneg %p138
        $region18: #{tpu_custom_call.1} parent=11 // pred_check_branch
          %480 = sbr.rel (%p478) target = $region20
        $region19: #{tpu_custom_call.1} parent=11 // pred_region
          _
        $region20: #{tpu_custom_call.1} parent=11 // pred_fallthru
          _
        // Predicated region
        $region21: #{tpu_custom_call.1} parent=11 // pred_check
          %p481 = pneg %p159
        $region22: #{tpu_custom_call.1} parent=11 // pred_check_branch
          %483 = sbr.rel (%p481) target = $region24
        $region23: #{tpu_custom_call.1} parent=11 // pred_region
          _
        $region24: #{tpu_custom_call.1} parent=11 // pred_fallthru
          _
        // Predicated region
        $region25: #{tpu_custom_call.1} parent=11 // pred_check
          %p484 = pneg %p180
        $region26: #{tpu_custom_call.1} parent=11 // pred_check_branch
          %486 = sbr.rel (%p484) target = $region28
        $region27: #{tpu_custom_call.1} parent=11 // pred_region
          %s488 = ssub.s32 16, 16
          %489 = vsyncadd [#allocation8], %s488
          %s491 = sshll.u32 [#allocation7], 4
          %s492 = int_to_ptr.vmem [resolvable:$true] %s491
          %494 = dma.hbm_to_vmem [thread:$0]  %s5, 16, %s492, [#allocation8]
        $region28: #{tpu_custom_call.1} parent=11 // pred_fallthru
          _
        // Predicated region
        $region29: #{tpu_custom_call.1} parent=11 // pred_check
          %p495 = pneg %p201
        $region30: #{tpu_custom_call.1} parent=11 // pred_check_branch
          %497 = sbr.rel (%p495) target = $region32
        $region31: #{tpu_custom_call.1} parent=11 // pred_region
          _
        $region32: #{tpu_custom_call.1} parent=11 // pred_fallthru
          _
        // Predicated region
        $region33: #{tpu_custom_call.1} parent=11 // pred_check
          %p498 = pneg %p222
        $region34: #{tpu_custom_call.1} parent=11 // pred_check_branch
          %500 = sbr.rel (%p498) target = $region36
        $region35: #{tpu_custom_call.1} parent=11 // pred_region
          %s502 = ssub.s32 16, 16
          %503 = vsyncadd [#allocation8], %s502
          %s505 = sshll.u32 [#allocation9], 4
          %s506 = int_to_ptr.vmem [resolvable:$true] %s505
          %508 = dma.hbm_to_vmem [thread:$0]  %s7, 16, %s506, [#allocation8]
        $region36: #{tpu_custom_call.1} parent=11 // pred_fallthru
          _
        // Predicated region
        $region37: #{tpu_custom_call.1} parent=11 // pred_check
          %p509 = pneg %p243
        $region38: #{tpu_custom_call.1} parent=11 // pred_check_branch
          %511 = sbr.rel (%p509) target = $region40
        $region39: #{tpu_custom_call.1} parent=11 // pred_region
          _
        $region40: #{tpu_custom_call.1} parent=11 // pred_fallthru
          _
        // Predicated region
        $region41: #{tpu_custom_call.1} parent=11 // pred_check
          %p512 = pneg %p264
        $region42: #{tpu_custom_call.1} parent=11 // pred_check_branch
          %514 = sbr.rel (%p512) target = $region44
        $region43: #{tpu_custom_call.1} parent=11 // pred_region
          %s516 = ssub.s32 16, 16
          %517 = vsyncadd [#allocation11], %s516
          %s519 = sshll.u32 [#allocation10], 4
          %s520 = int_to_ptr.vmem [resolvable:$true] %s519
          %522 = dma.hbm_to_vmem [thread:$0]  %s9, 16, %s520, [#allocation11]
        $region44: #{tpu_custom_call.1} parent=11 // pred_fallthru
          _
        // Predicated region
        $region45: #{tpu_custom_call.1} parent=11 // pred_check
          %p523 = pneg %p285
        $region46: #{tpu_custom_call.1} parent=11 // pred_check_branch
          %525 = sbr.rel (%p523) target = $region48
        $region47: #{tpu_custom_call.1} parent=11 // pred_region
          _
        $region48: #{tpu_custom_call.1} parent=11 // pred_fallthru
          _
        // Predicated region
        $region49: #{tpu_custom_call.1} parent=11 // pred_check
          %p526 = pneg %p306
        $region50: #{tpu_custom_call.1} parent=11 // pred_check_branch
          %528 = sbr.rel (%p526) target = $region52
        $region51: #{tpu_custom_call.1} parent=11 // pred_region
          _
        $region52: #{tpu_custom_call.1} parent=11 // pred_fallthru
          _
        // Predicated region
        $region53: #{tpu_custom_call.1} parent=11 // pred_check
          %p529 = pneg %p327
        $region54: #{tpu_custom_call.1} parent=11 // pred_check_branch
          %531 = sbr.rel (%p529) target = $region56
        $region55: #{tpu_custom_call.1} parent=11 // pred_region
          _
        $region56: #{tpu_custom_call.1} parent=11 // pred_fallthru
          _
        // Predicated region
        $region57: #{tpu_custom_call.1} parent=11 // pred_check
          %p532 = pneg %p348
        $region58: #{tpu_custom_call.1} parent=11 // pred_check_branch
          %534 = sbr.rel (%p532) target = $region60
        $region59: #{tpu_custom_call.1} parent=11 // pred_region
          _
        $region60: #{tpu_custom_call.1} parent=11 // pred_fallthru
          _
        // Predicated region
        $region61: #{tpu_custom_call.1} parent=11 // pred_check
          %p535 = pneg %p369
        $region62: #{tpu_custom_call.1} parent=11 // pred_check_branch
          %537 = sbr.rel (%p535) target = $region64
        $region63: #{tpu_custom_call.1} parent=11 // pred_region
          _
        $region64: #{tpu_custom_call.1} parent=11 // pred_fallthru
          _
        // Predicated region
        $region65: #{tpu_custom_call.1} parent=11 // pred_check
          %p538 = pneg %p390
        $region66: #{tpu_custom_call.1} parent=11 // pred_check_branch
          %540 = sbr.rel (%p538) target = $region68
        $region67: #{tpu_custom_call.1} parent=11 // pred_region
          _
        $region68: #{tpu_custom_call.1} parent=11 // pred_fallthru
          _
        // Predicated region
        $region69: #{tpu_custom_call.1} parent=11 // pred_check
          %p541 = pneg %p411
        $region70: #{tpu_custom_call.1} parent=11 // pred_check_branch
          %543 = sbr.rel (%p541) target = $region72
        $region71: #{tpu_custom_call.1} parent=11 // pred_region
          _
        $region72: #{tpu_custom_call.1} parent=11 // pred_fallthru
          _
        // Predicated region
        $region73: #{tpu_custom_call.1} parent=11 // pred_check
          %p544 = pneg %p432
        $region74: #{tpu_custom_call.1} parent=11 // pred_check_branch
          %546 = sbr.rel (%p544) target = $region76
        $region75: #{tpu_custom_call.1} parent=11 // pred_region
          _
        $region76: #{tpu_custom_call.1} parent=11 // pred_fallthru
          _
      $region12: #{tpu_custom_call.1} parent=5 // pred_fallthru
        _
      %p547 = scmp.lt.s32.totalorder %s32, 2
      // Predicated region
      $region77: #{tpu_custom_call.1} parent=5 // pred_check
        %p548 = pneg %p547
      $region78: #{tpu_custom_call.1} parent=5 // pred_check_branch
        %550 = sbr.rel (%p548) target = $region80
      $region79: #{tpu_custom_call.1} parent=5 // pred_region
        // Predicated region
        $region81: #{tpu_custom_call.1} parent=79 // pred_check
          %p551 = pneg %p64
        $region82: #{tpu_custom_call.1} parent=79 // pred_check_branch
          %553 = sbr.rel (%p551) target = $region84
        $region83: #{tpu_custom_call.1} parent=79 // pred_region
          %p554 = scmp.lt.s32.totalorder %s39, 1
          %s555 = scalar_select %p554, %s39, 1
          %s556 = smul.addr %s555, 8
          %s557 = scalar_lea.vmem %s0, %s556
        $region84: #{tpu_custom_call.1} parent=79 // pred_fallthru
          _
        // Predicated region
        $region85: #{tpu_custom_call.1} parent=79 // pred_check
          %p558 = pneg %p90
        $region86: #{tpu_custom_call.1} parent=79 // pred_check_branch
          %560 = sbr.rel (%p558) target = $region88
        $region87: #{tpu_custom_call.1} parent=79 // pred_region
          %s561 = sand.u32 %s80, 1
          %s562 = scalar_lea.sflag [#allocation5], %s561
          %s563 = sand.u32 %s80, 1
          %s564 = scalar_lea.vmem [#allocation4], %s563
          %s566 = ssub.s32 16, 16
          %567 = vsyncadd %s562, %s566
          %s568 = smul.addr %s39, 16
          %s569 = scalar_lea.hbm %s1, %s568
          %s571 = sshll.u32 %s564, 4
          %s572 = int_to_ptr.vmem [resolvable:$true] %s571
          %574 = dma.hbm_to_vmem [thread:$0]  %s569, 16, %s572, %s562
        $region88: #{tpu_custom_call.1} parent=79 // pred_fallthru
          _
      $region80: #{tpu_custom_call.1} parent=5 // pred_fallthru
        _
      %p575 = scmp.le.s32.totalorder 1, %s32
      %p576 = scmp.lt.s32.totalorder %s32, 3
      %p577 = pnand %p575, %p576
      %p578 = pneg %p577
      // Predicated region
      $region89: #{tpu_custom_call.1} parent=5 // pred_check
        _
      $region90: #{tpu_custom_call.1} parent=5 // pred_check_branch
        %580 = sbr.rel (%p577) target = $region92
      $region91: #{tpu_custom_call.1} parent=5 // pred_region
        %s581 = ssub.s32 %s32, 1
        %s582 = sand.u32 %s83, 1
        %s583 = scalar_lea.sflag [#allocation5], %s582
        %s584 = sand.u32 %s83, 1
        %s585 = scalar_lea.vmem [#allocation4], %s584
        // Predicated region
        $region93: #{tpu_custom_call.1} parent=91 // pred_check
          %p586 = pneg %p96
        $region94: #{tpu_custom_call.1} parent=91 // pred_check_branch
          %588 = sbr.rel (%p586) target = $region96
        $region95: #{tpu_custom_call.1} parent=91 // pred_region
          %589 = dma.done %s583, 16
        $region96: #{tpu_custom_call.1} parent=91 // pred_fallthru
          _
        // Predicated region
        $region97: #{tpu_custom_call.1} parent=91 // pred_check
          %p590 = pneg %p180
        $region98: #{tpu_custom_call.1} parent=91 // pred_check_branch
          %592 = sbr.rel (%p590) target = $region100
        $region99: #{tpu_custom_call.1} parent=91 // pred_region
          %593 = dma.done [#allocation8], 16
        $region100: #{tpu_custom_call.1} parent=91 // pred_fallthru
          _
        // Predicated region
        $region101: #{tpu_custom_call.1} parent=91 // pred_check
          %p594 = pneg %p222
        $region102: #{tpu_custom_call.1} parent=91 // pred_check_branch
          %596 = sbr.rel (%p594) target = $region104
        $region103: #{tpu_custom_call.1} parent=91 // pred_region
          %597 = dma.done [#allocation8], 16
        $region104: #{tpu_custom_call.1} parent=91 // pred_fallthru
          _
        // Predicated region
        $region105: #{tpu_custom_call.1} parent=91 // pred_check
          %p598 = pneg %p264
        $region106: #{tpu_custom_call.1} parent=91 // pred_check_branch
          %600 = sbr.rel (%p598) target = $region108
        $region107: #{tpu_custom_call.1} parent=91 // pred_region
          %601 = dma.done [#allocation11], 16
        $region108: #{tpu_custom_call.1} parent=91 // pred_fallthru
          _
        %p602 = scmp.lt.s32.totalorder %s41, 1
        %s603 = scalar_select %p602, %s41, 1
        %s604 = smul.addr %s603, 8
        %s605 = scalar_lea.vmem %s0, %s604
        %p606 = pneg %p70
        %p607 = pneg %p67
        %s608 = sand.u32 %s83, 1
        %s609 = scalar_lea.sflag [#allocation5], %s608
        %s610 = sand.u32 %s83, 1
        %s611 = scalar_lea.vmem [#allocation4], %s610
        %p612 = pneg %p96
        %p613 = pneg %p93
        %p614 = pneg %p117
        %p615 = pneg %p114
        %p616 = pneg %p138
        %p617 = pneg %p135
        %p618 = pneg %p159
        %p619 = pneg %p156
        %p620 = pneg %p180
        %p621 = pneg %p177
        %p622 = pneg %p201
        %p623 = pneg %p198
        %p624 = pneg %p222
        %p625 = pneg %p219
        %p626 = pneg %p243
        %p627 = pneg %p240
        %p628 = pneg %p264
        %p629 = pneg %p261
        %p630 = pneg %p285
        %p631 = pneg %p282
        %p632 = pneg %p306
        %p633 = pneg %p303
        %p634 = pneg %p327
        %p635 = pneg %p324
        %p636 = pneg %p348
        %p637 = pneg %p345
        %p638 = pneg %p369
        %p639 = pneg %p366
        %p640 = pneg %p390
        %p641 = pneg %p387
        %p642 = pneg %p411
        %p643 = pneg %p408
        %p644 = pneg %p432
        %p645 = pneg %p429
        %p646 = pneg %p460
        %p647 = pneg %p457
        %s648 = sand.u32 %s447, 1
        %s649 = scalar_lea.sflag [#allocation6], %s648
        %s650 = sand.u32 %s447, 1
        %s651 = smul.addr %s650, 8
        %s652 = scalar_lea.vmem [#allocation12], %s651
        %p653 = scmp.lt.s32.totalorder %s41, 1
        %s654 = scalar_select %p653, %s41, 1
        %s655 = smul.addr %s654, 8
        %s656 = scalar_lea.vmem %s0, %s655
        %p658 = scmp.eq.s32.totalorder %s42, 0
        // Predicated region
        $region109: #{tpu_custom_call.1} parent=91 // pred_check
          %p659 = pneg %p658
        $region110: #{tpu_custom_call.1} parent=91 // pred_check_branch
          %661 = sbr.rel (%p659) target = $region112
        $region111: #{tpu_custom_call.1} parent=91 // pred_region
          %v662 = vld [vmem:[%s656] sm:$0xff]
          %v663 = vpack.c.bf16 %v662, %v662
          %v664 = vld [vmem:[%s3] sm:$0xf]
          %v665 = vld [vmem:[%s3 + $0x4] sm:$0xf]
          %v666 = vld [vmem:[%s3 + $0x8] sm:$0xf]
          %v667 = vld [vmem:[%s3 + $0xc] sm:$0xf]
          %v672 = vunpack.c.l.b16 %v664
          %v673 = vunpack.c.l.b16 %v665
          %v674 = vunpack.c.l.b16 %v666
          %v675 = vunpack.c.l.b16 %v667
          %v676 = vpack.c.b16 %v673, %v672
          %v677 = vpack.c.b16 %v675, %v674
          %vm680 = vcmask 261120
          %v682 = vsel %vm680, %v663, 0
          %684 = vmatprep.subr.bf16.mxu0 0
          %685 = vmatpush1.bf16.msra.mxu0 0
          %686 = vmatprep.subr.bf16.mxu0 0
          %687 = vmatpush1.bf16.msra.mxu0 0
          %688 = vmatprep.subr.bf16.mxu0 0
          %689 = vmatpush1.bf16.msra.mxu0 0
          %690 = vmatprep.subr.bf16.mxu0 0
          %691 = vmatpush1.bf16.msra.mxu0 0
          %692 = vmatprep.subr.bf16.mxu0 0
          %693 = vmatpush1.bf16.msra.mxu0 0
          %694 = vmatprep.subr.bf16.mxu0 0
          %695 = vmatpush1.bf16.msra.mxu0 0
          %696 = vmatprep.subr.bf16.mxu0 0
          %697 = vmatpush1.bf16.msra.mxu0 %v677
          %698 = vmatprep.subr.bf16.mxu0 0
          %699 = vmatpush1.bf16.msra.mxu0 %v676
          %700 = vmatprep.subr.bf16.mxu0 0
          %701 = vmatpush2.bf16.msra.mxu0 0
          %702 = vmatprep.subr.bf16.mxu0 0
          %703 = vmatpush2.bf16.msra.mxu0 0
          %704 = vmatprep.subr.bf16.mxu0 0
          %705 = vmatpush2.bf16.msra.mxu0 0
          %706 = vmatprep.subr.bf16.mxu0 0
          %707 = vmatpush2.bf16.msra.mxu0 0
          %708 = vmatprep.subr.bf16.mxu0 0
          %709 = vmatpush2.bf16.msra.mxu0 0
          %710 = vmatprep.subr.bf16.mxu0 0
          %711 = vmatpush2.bf16.msra.mxu0 0
          %712 = vmatprep.subr.bf16.mxu0 0
          %713 = vmatpush2.bf16.msra.mxu0 0
          %714 = vmatprep.subr.bf16.mxu0 0
          %715 = vmatpush2.bf16.msra.mxu0 0
          %716 = vmatprep.mubr.bf16.mxu0 0
          %717 = vmatmul.mubr.bf16.gmra.mxu0 %v682
          %v718 = vpop.f32.mrf.mxu0
          %v719 = vadd.f32 0.0, %v718
          %v720 = vpop.f32.mrf.mxu0
          %v721 = vpop.f32.mrf.mxu0
          %v722 = vpop.f32.mrf.mxu0
          %723 = vdwg.mxu0
          %724 = vxpose.xlu0.b32.start [1/16] %v719, 128
          %725 = vxpose.xlu0.b32.cont [2/16] 0.0, 128
          %726 = vxpose.xlu0.b32.cont [3/16] 0.0, 128
          %727 = vxpose.xlu0.b32.cont [4/16] 0.0, 128
          %728 = vxpose.xlu0.b32.cont [5/16] 0.0, 128
          %729 = vxpose.xlu0.b32.cont [6/16] 0.0, 128
          %730 = vxpose.xlu0.b32.cont [7/16] 0.0, 128
          %731 = vxpose.xlu0.b32.cont [8/16] 0.0, 128
          %732 = vxpose.xlu0.b32.cont [9/16] 0.0, 128
          %733 = vxpose.xlu0.b32.cont [10/16] 0.0, 128
          %734 = vxpose.xlu0.b32.cont [11/16] 0.0, 128
          %735 = vxpose.xlu0.b32.cont [12/16] 0.0, 128
          %736 = vxpose.xlu0.b32.cont [13/16] 0.0, 128
          %737 = vxpose.xlu0.b32.cont [14/16] 0.0, 128
          %738 = vxpose.xlu0.b32.cont [15/16] 0.0, 128
          %739 = vxpose.xlu0.b32.end [16/16] 0.0, 128
          %v740 = vpop.trf.xlu0
          %v741 = vpop.trf.xlu0
          %v742 = vpop.trf.xlu0
          %v743 = vpop.trf.xlu0
          %v744 = vpop.trf.xlu0
          %v745 = vpop.trf.xlu0
          %v746 = vpop.trf.xlu0
          %v747 = vpop.trf.xlu0
          %v748 = vpop.trf.xlu0
          %v749 = vpop.trf.xlu0
          %v750 = vpop.trf.xlu0
          %v751 = vpop.trf.xlu0
          %v752 = vpop.trf.xlu0
          %v753 = vpop.trf.xlu0
          %v754 = vpop.trf.xlu0
          %v755 = vpop.trf.xlu0
          %v756 = vpack.c.bf16 %v740, %v740
          %vm757 = vcmask 60416
          %758 = vst.msk [vmem:[#allocation2] sm:$0xf] %vm757, %v756
          %v759 = vpack.c.bf16 %v719, %v719
          %v761 = vunpack.c.l.b16 %v759
          %v762 = vpack.c.b16 %v761, %v761
          %763 = vrot.lane.b32.xlu0 %v762, 96
          %v764 = vpop.permute.xlu0 %763
          %766 = vst.msk [vmem:[#allocation3] sm:$0xf] %vm757, %v764
          %768 = vrot.lane.b32.xlu0 %v719, 120
          %v769 = vpop.permute.xlu0 %768
          %771 = vxpose.xlu0.b32.start [1/16] %v769, 128
          %772 = vxpose.xlu0.b32.cont [2/16] 0.0, 128
          %773 = vxpose.xlu0.b32.cont [3/16] 0.0, 128
          %774 = vxpose.xlu0.b32.cont [4/16] 0.0, 128
          %775 = vxpose.xlu0.b32.cont [5/16] 0.0, 128
          %776 = vxpose.xlu0.b32.cont [6/16] 0.0, 128
          %777 = vxpose.xlu0.b32.cont [7/16] 0.0, 128
          %778 = vxpose.xlu0.b32.cont [8/16] 0.0, 128
          %779 = vxpose.xlu0.b32.cont [9/16] 0.0, 128
          %780 = vxpose.xlu0.b32.cont [10/16] 0.0, 128
          %781 = vxpose.xlu0.b32.cont [11/16] 0.0, 128
          %782 = vxpose.xlu0.b32.cont [12/16] 0.0, 128
          %783 = vxpose.xlu0.b32.cont [13/16] 0.0, 128
          %784 = vxpose.xlu0.b32.cont [14/16] 0.0, 128
          %785 = vxpose.xlu0.b32.cont [15/16] 0.0, 128
          %786 = vxpose.xlu0.b32.end [16/16] 0.0, 128
          %v787 = vpop.trf.xlu0
          %v788 = vpop.trf.xlu0
          %v789 = vpop.trf.xlu0
          %v790 = vpop.trf.xlu0
          %v791 = vpop.trf.xlu0
          %v792 = vpop.trf.xlu0
          %v793 = vpop.trf.xlu0
          %v794 = vpop.trf.xlu0
          %v795 = vpop.trf.xlu0
          %v796 = vpop.trf.xlu0
          %v797 = vpop.trf.xlu0
          %v798 = vpop.trf.xlu0
          %v799 = vpop.trf.xlu0
          %v800 = vpop.trf.xlu0
          %v801 = vpop.trf.xlu0
          %v802 = vpop.trf.xlu0
          %v803 = vpack.c.bf16 %v787, %v787
          %s804 = scalar_lea.vmem [#allocation2], 4
          %805 = vst.msk [vmem:[%s804] sm:$0xf] %vm757, %v803
          %806 = vrot.lane.b32.xlu0 %v762, 88
          %v807 = vpop.permute.xlu0 %806
          %s809 = scalar_lea.vmem [#allocation3], 4
          %810 = vst.msk [vmem:[%s809] sm:$0xf] %vm757, %v807
          %811 = vrot.lane.b32.xlu0 %v719, 112
          %v812 = vpop.permute.xlu0 %811
          %814 = vxpose.xlu0.b32.start [1/16] %v812, 128
          %815 = vxpose.xlu0.b32.cont [2/16] 0.0, 128
          %816 = vxpose.xlu0.b32.cont [3/16] 0.0, 128
          %817 = vxpose.xlu0.b32.cont [4/16] 0.0, 128
          %818 = vxpose.xlu0.b32.cont [5/16] 0.0, 128
          %819 = vxpose.xlu0.b32.cont [6/16] 0.0, 128
          %820 = vxpose.xlu0.b32.cont [7/16] 0.0, 128
          %821 = vxpose.xlu0.b32.cont [8/16] 0.0, 128
          %822 = vxpose.xlu0.b32.cont [9/16] 0.0, 128
          %823 = vxpose.xlu0.b32.cont [10/16] 0.0, 128
          %824 = vxpose.xlu0.b32.cont [11/16] 0.0, 128
          %825 = vxpose.xlu0.b32.cont [12/16] 0.0, 128
          %826 = vxpose.xlu0.b32.cont [13/16] 0.0, 128
          %827 = vxpose.xlu0.b32.cont [14/16] 0.0, 128
          %828 = vxpose.xlu0.b32.cont [15/16] 0.0, 128
          %829 = vxpose.xlu0.b32.end [16/16] 0.0, 128
          %v830 = vpop.trf.xlu0
          %v831 = vpop.trf.xlu0
          %v832 = vpop.trf.xlu0
          %v833 = vpop.trf.xlu0
          %v834 = vpop.trf.xlu0
          %v835 = vpop.trf.xlu0
          %v836 = vpop.trf.xlu0
          %v837 = vpop.trf.xlu0
          %v838 = vpop.trf.xlu0
          %v839 = vpop.trf.xlu0
          %v840 = vpop.trf.xlu0
          %v841 = vpop.trf.xlu0
          %v842 = vpop.trf.xlu0
          %v843 = vpop.trf.xlu0
          %v844 = vpop.trf.xlu0
          %v845 = vpop.trf.xlu0
          %v846 = vpack.c.bf16 %v830, %v830
          %s847 = scalar_lea.vmem [#allocation2], 8
          %848 = vst.msk [vmem:[%s847] sm:$0xf] %vm757, %v846
          %849 = vrot.lane.b32.xlu0 %v762, 80
          %v850 = vpop.permute.xlu0 %849
          %s852 = scalar_lea.vmem [#allocation3], 8
          %853 = vst.msk [vmem:[%s852] sm:$0xf] %vm757, %v850
          %854 = vrot.lane.b32.xlu0 %v719, 104
          %v855 = vpop.permute.xlu0 %854
          %857 = vxpose.xlu0.b32.start [1/16] %v855, 128
          %858 = vxpose.xlu0.b32.cont [2/16] 0.0, 128
          %859 = vxpose.xlu0.b32.cont [3/16] 0.0, 128
          %860 = vxpose.xlu0.b32.cont [4/16] 0.0, 128
          %861 = vxpose.xlu0.b32.cont [5/16] 0.0, 128
          %862 = vxpose.xlu0.b32.cont [6/16] 0.0, 128
          %863 = vxpose.xlu0.b32.cont [7/16] 0.0, 128
          %864 = vxpose.xlu0.b32.cont [8/16] 0.0, 128
          %865 = vxpose.xlu0.b32.cont [9/16] 0.0, 128
          %866 = vxpose.xlu0.b32.cont [10/16] 0.0, 128
          %867 = vxpose.xlu0.b32.cont [11/16] 0.0, 128
          %868 = vxpose.xlu0.b32.cont [12/16] 0.0, 128
          %869 = vxpose.xlu0.b32.cont [13/16] 0.0, 128
          %870 = vxpose.xlu0.b32.cont [14/16] 0.0, 128
          %871 = vxpose.xlu0.b32.cont [15/16] 0.0, 128
          %872 = vxpose.xlu0.b32.end [16/16] 0.0, 128
          %v873 = vpop.trf.xlu0
          %v874 = vpop.trf.xlu0
          %v875 = vpop.trf.xlu0
          %v876 = vpop.trf.xlu0
          %v877 = vpop.trf.xlu0
          %v878 = vpop.trf.xlu0
          %v879 = vpop.trf.xlu0
          %v880 = vpop.trf.xlu0
          %v881 = vpop.trf.xlu0
          %v882 = vpop.trf.xlu0
          %v883 = vpop.trf.xlu0
          %v884 = vpop.trf.xlu0
          %v885 = vpop.trf.xlu0
          %v886 = vpop.trf.xlu0
          %v887 = vpop.trf.xlu0
          %v888 = vpop.trf.xlu0
          %v889 = vpack.c.bf16 %v873, %v873
          %s890 = scalar_lea.vmem [#allocation2], 12
          %891 = vst.msk [vmem:[%s890] sm:$0xf] %vm757, %v889
          %892 = vrot.lane.b32.xlu0 %v762, 72
          %v893 = vpop.permute.xlu0 %892
          %s895 = scalar_lea.vmem [#allocation3], 12
          %896 = vst.msk [vmem:[%s895] sm:$0xf] %vm757, %v893
        $region112: #{tpu_custom_call.1} parent=91 // pred_fallthru
          _
        %s897 = smul.u32 %s42, 8
        %s898 = scalar_lea.vmem %s656, %s897
        %v899 = vld [vmem:[%s898] sm:$0xff]
        %v900 = vpack.c.bf16 %v899, %v899
        %v901 = vld [vmem:[%s585] sm:$0x1]
        %vm902 = vcmp.eq.f32.partialorder %v901, 0.0
        %v903 = vsel %vm902, -1e+09, 0.0
        %v904 = vld [vmem:[%s2] sm:$0xf]
        %v905 = vld [vmem:[%s2 + $0x4] sm:$0xf]
        %v906 = vld [vmem:[%s2 + $0x8] sm:$0xf]
        %v907 = vld [vmem:[%s2 + $0xc] sm:$0xf]
        %v912 = vunpack.c.l.b16 %v904
        %v913 = vunpack.c.l.b16 %v905
        %v914 = vunpack.c.l.b16 %v906
        %v915 = vunpack.c.l.b16 %v907
        %v916 = vpack.c.b16 %v913, %v912
        %v917 = vpack.c.b16 %v915, %v914
        %vm920 = vcmask 261120
        %v922 = vsel %vm920, %v900, 0
        %924 = vmatprep.subr.bf16.mxu0 0
        %925 = vmatpush1.bf16.msra.mxu0 0
        %926 = vmatprep.subr.bf16.mxu0 0
        %927 = vmatpush1.bf16.msra.mxu0 0
        %928 = vmatprep.subr.bf16.mxu0 0
        %929 = vmatpush1.bf16.msra.mxu0 0
        %930 = vmatprep.subr.bf16.mxu0 0
        %931 = vmatpush1.bf16.msra.mxu0 0
        %932 = vmatprep.subr.bf16.mxu0 0
        %933 = vmatpush1.bf16.msra.mxu0 0
        %934 = vmatprep.subr.bf16.mxu0 0
        %935 = vmatpush1.bf16.msra.mxu0 0
        %936 = vmatprep.subr.bf16.mxu0 0
        %937 = vmatpush1.bf16.msra.mxu0 %v917
        %938 = vmatprep.subr.bf16.mxu0 0
        %939 = vmatpush1.bf16.msra.mxu0 %v916
        %940 = vmatprep.subr.bf16.mxu0 0
        %941 = vmatpush2.bf16.msra.mxu0 0
        %942 = vmatprep.subr.bf16.mxu0 0
        %943 = vmatpush2.bf16.msra.mxu0 0
        %944 = vmatprep.subr.bf16.mxu0 0
        %945 = vmatpush2.bf16.msra.mxu0 0
        %946 = vmatprep.subr.bf16.mxu0 0
        %947 = vmatpush2.bf16.msra.mxu0 0
        %948 = vmatprep.subr.bf16.mxu0 0
        %949 = vmatpush2.bf16.msra.mxu0 0
        %950 = vmatprep.subr.bf16.mxu0 0
        %951 = vmatpush2.bf16.msra.mxu0 0
        %952 = vmatprep.subr.bf16.mxu0 0
        %953 = vmatpush2.bf16.msra.mxu0 0
        %954 = vmatprep.subr.bf16.mxu0 0
        %955 = vmatpush2.bf16.msra.mxu0 0
        %956 = vmatprep.mubr.bf16.mxu0 0
        %957 = vmatmul.mubr.bf16.gmra.mxu0 %v922
        %v958 = vpop.f32.mrf.mxu0
        %v959 = vadd.f32 0.0, %v958
        %v960 = vpop.f32.mrf.mxu0
        %v961 = vpop.f32.mrf.mxu0
        %v962 = vpop.f32.mrf.mxu0
        %963 = vdwg.mxu0
        %v964 = vpack.c.bf16 %v959, %v959
        %v965 = vld [vmem:[#allocation2] sm:$0xf]
        %v967 = vlaneseq
        %v968 = vshrl.u32 %v967, 7
        %v969 = vsub.s32 0, %v968
        %v970 = vrot.slane %v903, %v969
        %vm972 = vcmask 64512
        %v974 = vsel %vm972, %v964, 0
        %vm976 = vcmask 1043456
        %v978 = vsel %vm976, %v965, 0
        %980 = vmatprep.subr.bf16.mxu0 0
        %981 = vmatpush1.bf16.msra.mxu0 0
        %982 = vmatprep.subr.bf16.mxu0 0
        %983 = vmatpush1.bf16.msra.mxu0 0
        %984 = vmatprep.subr.bf16.mxu0 0
        %985 = vmatpush1.bf16.msra.mxu0 0
        %986 = vmatprep.subr.bf16.mxu0 0
        %987 = vmatpush1.bf16.msra.mxu0 0
        %988 = vmatprep.subr.bf16.mxu0 0
        %989 = vmatpush1.bf16.msra.mxu0 0
        %990 = vmatprep.subr.bf16.mxu0 0
        %991 = vmatpush1.bf16.msra.mxu0 0
        %992 = vmatprep.subr.bf16.mxu0 0
        %993 = vmatpush1.bf16.msra.mxu0 0
        %994 = vmatprep.subr.bf16.mxu0 0
        %995 = vmatpush1.bf16.msra.mxu0 %v978
        %996 = vmatprep.subr.bf16.mxu0 0
        %997 = vmatpush2.bf16.msra.mxu0 0
        %998 = vmatprep.subr.bf16.mxu0 0
        %999 = vmatpush2.bf16.msra.mxu0 0
        %1000 = vmatprep.subr.bf16.mxu0 0
        %1001 = vmatpush2.bf16.msra.mxu0 0
        %1002 = vmatprep.subr.bf16.mxu0 0
        %1003 = vmatpush2.bf16.msra.mxu0 0
        %1004 = vmatprep.subr.bf16.mxu0 0
        %1005 = vmatpush2.bf16.msra.mxu0 0
        %1006 = vmatprep.subr.bf16.mxu0 0
        %1007 = vmatpush2.bf16.msra.mxu0 0
        %1008 = vmatprep.subr.bf16.mxu0 0
        %1009 = vmatpush2.bf16.msra.mxu0 0
        %1010 = vmatprep.subr.bf16.mxu0 0
        %1011 = vmatpush2.bf16.msra.mxu0 0
        %1012 = vmatprep.mubr.bf16.mxu0 0
        %1013 = vmatmul.mubr.bf16.gmra.mxu0 %v974
        %v1014 = vpop.f32.mrf.mxu0
        %v1015 = vadd.f32 %v970, %v1014
        %v1016 = vpop.f32.mrf.mxu0
        %v1017 = vpop.f32.mrf.mxu0
        %v1018 = vpop.f32.mrf.mxu0
        %1019 = vdwg.mxu0
        %v1020 = vsel %vm972, %v1015, -inf
        %1021 = vmax.xlane.f32.xlu0 %v1020
        %v1022 = vpop.xlane.xlu0 %1021
        %v1023 = vsub.f32 %v1015, %v1022
        %v1024 = vmul.f32 %v1023, 1.442695
        %v1025 = vpow.pop %v1024
        %v1026 = vsel %vm972, %v1025, 0.0
        %1027 = vadd.xlane.f32.xlu0 %v1026
        %v1028 = vpop.xlane.xlu0 %1027
        %v1029 = vrcp.pop %v1028
        %v1030 = vmul.f32 %v1025, %v1029
        %v1031 = vpack.c.bf16 %v1030, %v1030
        %v1032 = vld [vmem:[#allocation3] sm:$0xf]
        %v1034 = vsel %vm972, %v1031, 0
        %v1037 = vsel %vm976, %v1032, 0
        %1039 = vmatprep.subr.bf16.mxu0 0
        %1040 = vmatpush1.bf16.msra.mxu0 0
        %1041 = vmatprep.subr.bf16.mxu0 0
        %1042 = vmatpush1.bf16.msra.mxu0 0
        %1043 = vmatprep.subr.bf16.mxu0 0
        %1044 = vmatpush1.bf16.msra.mxu0 0
        %1045 = vmatprep.subr.bf16.mxu0 0
        %1046 = vmatpush1.bf16.msra.mxu0 0
        %1047 = vmatprep.subr.bf16.mxu0 0
        %1048 = vmatpush1.bf16.msra.mxu0 0
        %1049 = vmatprep.subr.bf16.mxu0 0
        %1050 = vmatpush1.bf16.msra.mxu0 0
        %1051 = vmatprep.subr.bf16.mxu0 0
        %1052 = vmatpush1.bf16.msra.mxu0 0
        %1053 = vmatprep.subr.bf16.mxu0 0
        %1054 = vmatpush1.bf16.msra.mxu0 %v1037
        %1055 = vmatprep.subr.bf16.mxu0 0
        %1056 = vmatpush2.bf16.msra.mxu0 0
        %1057 = vmatprep.subr.bf16.mxu0 0
        %1058 = vmatpush2.bf16.msra.mxu0 0
        %1059 = vmatprep.subr.bf16.mxu0 0
        %1060 = vmatpush2.bf16.msra.mxu0 0
        %1061 = vmatprep.subr.bf16.mxu0 0
        %1062 = vmatpush2.bf16.msra.mxu0 0
        %1063 = vmatprep.subr.bf16.mxu0 0
        %1064 = vmatpush2.bf16.msra.mxu0 0
        %1065 = vmatprep.subr.bf16.mxu0 0
        %1066 = vmatpush2.bf16.msra.mxu0 0
        %1067 = vmatprep.subr.bf16.mxu0 0
        %1068 = vmatpush2.bf16.msra.mxu0 0
        %1069 = vmatprep.subr.bf16.mxu0 0
        %1070 = vmatpush2.bf16.msra.mxu0 0
        %1071 = vmatprep.mubr.bf16.mxu0 0
        %1072 = vmatmul.mubr.bf16.gmra.mxu0 %v1034
        %v1073 = vpop.f32.mrf.mxu0
        %v1074 = vadd.f32 0.0, %v1073
        %v1075 = vpop.f32.mrf.mxu0
        %v1076 = vpop.f32.mrf.mxu0
        %v1077 = vpop.f32.mrf.mxu0
        %1078 = vdwg.mxu0
        %s1079 = scalar_lea.vmem [#allocation2], 4
        %v1080 = vld [vmem:[%s1079] sm:$0xf]
        %1082 = vrot.lane.b32.xlu0 %v964, 120
        %v1083 = vpop.permute.xlu0 %1082
        %v1085 = vsel %vm972, %v1083, 0
        %v1088 = vsel %vm976, %v1080, 0
        %1090 = vmatprep.subr.bf16.mxu0 0
        %1091 = vmatpush1.bf16.msra.mxu0 0
        %1092 = vmatprep.subr.bf16.mxu0 0
        %1093 = vmatpush1.bf16.msra.mxu0 0
        %1094 = vmatprep.subr.bf16.mxu0 0
        %1095 = vmatpush1.bf16.msra.mxu0 0
        %1096 = vmatprep.subr.bf16.mxu0 0
        %1097 = vmatpush1.bf16.msra.mxu0 0
        %1098 = vmatprep.subr.bf16.mxu0 0
        %1099 = vmatpush1.bf16.msra.mxu0 0
        %1100 = vmatprep.subr.bf16.mxu0 0
        %1101 = vmatpush1.bf16.msra.mxu0 0
        %1102 = vmatprep.subr.bf16.mxu0 0
        %1103 = vmatpush1.bf16.msra.mxu0 0
        %1104 = vmatprep.subr.bf16.mxu0 0
        %1105 = vmatpush1.bf16.msra.mxu0 %v1088
        %1106 = vmatprep.subr.bf16.mxu0 0
        %1107 = vmatpush2.bf16.msra.mxu0 0
        %1108 = vmatprep.subr.bf16.mxu0 0
        %1109 = vmatpush2.bf16.msra.mxu0 0
        %1110 = vmatprep.subr.bf16.mxu0 0
        %1111 = vmatpush2.bf16.msra.mxu0 0
        %1112 = vmatprep.subr.bf16.mxu0 0
        %1113 = vmatpush2.bf16.msra.mxu0 0
        %1114 = vmatprep.subr.bf16.mxu0 0
        %1115 = vmatpush2.bf16.msra.mxu0 0
        %1116 = vmatprep.subr.bf16.mxu0 0
        %1117 = vmatpush2.bf16.msra.mxu0 0
        %1118 = vmatprep.subr.bf16.mxu0 0
        %1119 = vmatpush2.bf16.msra.mxu0 0
        %1120 = vmatprep.subr.bf16.mxu0 0
        %1121 = vmatpush2.bf16.msra.mxu0 0
        %1122 = vmatprep.mubr.bf16.mxu0 0
        %1123 = vmatmul.mubr.bf16.gmra.mxu0 %v1085
        %v1124 = vpop.f32.mrf.mxu0
        %v1125 = vadd.f32 %v970, %v1124
        %v1126 = vpop.f32.mrf.mxu0
        %v1127 = vpop.f32.mrf.mxu0
        %v1128 = vpop.f32.mrf.mxu0
        %1129 = vdwg.mxu0
        %v1130 = vsel %vm972, %v1125, -inf
        %1131 = vmax.xlane.f32.xlu0 %v1130
        %v1132 = vpop.xlane.xlu0 %1131
        %v1133 = vsub.f32 %v1125, %v1132
        %v1134 = vmul.f32 %v1133, 1.442695
        %v1135 = vpow.pop %v1134
        %v1136 = vsel %vm972, %v1135, 0.0
        %1137 = vadd.xlane.f32.xlu0 %v1136
        %v1138 = vpop.xlane.xlu0 %1137
        %v1139 = vrcp.pop %v1138
        %v1140 = vmul.f32 %v1135, %v1139
        %v1141 = vpack.c.bf16 %v1140, %v1140
        %s1142 = scalar_lea.vmem [#allocation3], 4
        %v1143 = vld [vmem:[%s1142] sm:$0xf]
        %v1145 = vsel %vm972, %v1141, 0
        %v1148 = vsel %vm976, %v1143, 0
        %1150 = vmatprep.subr.bf16.mxu0 0
        %1151 = vmatpush1.bf16.msra.mxu0 0
        %1152 = vmatprep.subr.bf16.mxu0 0
        %1153 = vmatpush1.bf16.msra.mxu0 0
        %1154 = vmatprep.subr.bf16.mxu0 0
        %1155 = vmatpush1.bf16.msra.mxu0 0
        %1156 = vmatprep.subr.bf16.mxu0 0
        %1157 = vmatpush1.bf16.msra.mxu0 0
        %1158 = vmatprep.subr.bf16.mxu0 0
        %1159 = vmatpush1.bf16.msra.mxu0 0
        %1160 = vmatprep.subr.bf16.mxu0 0
        %1161 = vmatpush1.bf16.msra.mxu0 0
        %1162 = vmatprep.subr.bf16.mxu0 0
        %1163 = vmatpush1.bf16.msra.mxu0 0
        %1164 = vmatprep.subr.bf16.mxu0 0
        %1165 = vmatpush1.bf16.msra.mxu0 %v1148
        %1166 = vmatprep.subr.bf16.mxu0 0
        %1167 = vmatpush2.bf16.msra.mxu0 0
        %1168 = vmatprep.subr.bf16.mxu0 0
        %1169 = vmatpush2.bf16.msra.mxu0 0
        %1170 = vmatprep.subr.bf16.mxu0 0
        %1171 = vmatpush2.bf16.msra.mxu0 0
        %1172 = vmatprep.subr.bf16.mxu0 0
        %1173 = vmatpush2.bf16.msra.mxu0 0
        %1174 = vmatprep.subr.bf16.mxu0 0
        %1175 = vmatpush2.bf16.msra.mxu0 0
        %1176 = vmatprep.subr.bf16.mxu0 0
        %1177 = vmatpush2.bf16.msra.mxu0 0
        %1178 = vmatprep.subr.bf16.mxu0 0
        %1179 = vmatpush2.bf16.msra.mxu0 0
        %1180 = vmatprep.subr.bf16.mxu0 0
        %1181 = vmatpush2.bf16.msra.mxu0 0
        %1182 = vmatprep.mubr.bf16.mxu0 0
        %1183 = vmatmul.mubr.bf16.gmra.mxu0 %v1145
        %v1184 = vpop.f32.mrf.mxu0
        %v1185 = vadd.f32 0.0, %v1184
        %v1186 = vpop.f32.mrf.mxu0
        %v1187 = vpop.f32.mrf.mxu0
        %v1188 = vpop.f32.mrf.mxu0
        %1189 = vdwg.mxu0
        %s1190 = scalar_lea.vmem [#allocation2], 8
        %v1191 = vld [vmem:[%s1190] sm:$0xf]
        %1192 = vrot.lane.b32.xlu0 %v964, 112
        %v1193 = vpop.permute.xlu0 %1192
        %v1195 = vsel %vm972, %v1193, 0
        %v1198 = vsel %vm976, %v1191, 0
        %1200 = vmatprep.subr.bf16.mxu0 0
        %1201 = vmatpush1.bf16.msra.mxu0 0
        %1202 = vmatprep.subr.bf16.mxu0 0
        %1203 = vmatpush1.bf16.msra.mxu0 0
        %1204 = vmatprep.subr.bf16.mxu0 0
        %1205 = vmatpush1.bf16.msra.mxu0 0
        %1206 = vmatprep.subr.bf16.mxu0 0
        %1207 = vmatpush1.bf16.msra.mxu0 0
        %1208 = vmatprep.subr.bf16.mxu0 0
        %1209 = vmatpush1.bf16.msra.mxu0 0
        %1210 = vmatprep.subr.bf16.mxu0 0
        %1211 = vmatpush1.bf16.msra.mxu0 0
        %1212 = vmatprep.subr.bf16.mxu0 0
        %1213 = vmatpush1.bf16.msra.mxu0 0
        %1214 = vmatprep.subr.bf16.mxu0 0
        %1215 = vmatpush1.bf16.msra.mxu0 %v1198
        %1216 = vmatprep.subr.bf16.mxu0 0
        %1217 = vmatpush2.bf16.msra.mxu0 0
        %1218 = vmatprep.subr.bf16.mxu0 0
        %1219 = vmatpush2.bf16.msra.mxu0 0
        %1220 = vmatprep.subr.bf16.mxu0 0
        %1221 = vmatpush2.bf16.msra.mxu0 0
        %1222 = vmatprep.subr.bf16.mxu0 0
        %1223 = vmatpush2.bf16.msra.mxu0 0
        %1224 = vmatprep.subr.bf16.mxu0 0
        %1225 = vmatpush2.bf16.msra.mxu0 0
        %1226 = vmatprep.subr.bf16.mxu0 0
        %1227 = vmatpush2.bf16.msra.mxu0 0
        %1228 = vmatprep.subr.bf16.mxu0 0
        %1229 = vmatpush2.bf16.msra.mxu0 0
        %1230 = vmatprep.subr.bf16.mxu0 0
        %1231 = vmatpush2.bf16.msra.mxu0 0
        %1232 = vmatprep.mubr.bf16.mxu0 0
        %1233 = vmatmul.mubr.bf16.gmra.mxu0 %v1195
        %v1234 = vpop.f32.mrf.mxu0
        %v1235 = vadd.f32 %v970, %v1234
        %v1236 = vpop.f32.mrf.mxu0
        %v1237 = vpop.f32.mrf.mxu0
        %v1238 = vpop.f32.mrf.mxu0
        %1239 = vdwg.mxu0
        %v1240 = vsel %vm972, %v1235, -inf
        %1241 = vmax.xlane.f32.xlu0 %v1240
        %v1242 = vpop.xlane.xlu0 %1241
        %v1243 = vsub.f32 %v1235, %v1242
        %v1244 = vmul.f32 %v1243, 1.442695
        %v1245 = vpow.pop %v1244
        %v1246 = vsel %vm972, %v1245, 0.0
        %1247 = vadd.xlane.f32.xlu0 %v1246
        %v1248 = vpop.xlane.xlu0 %1247
        %v1249 = vrcp.pop %v1248
        %v1250 = vmul.f32 %v1245, %v1249
        %v1251 = vpack.c.bf16 %v1250, %v1250
        %s1252 = scalar_lea.vmem [#allocation3], 8
        %v1253 = vld [vmem:[%s1252] sm:$0xf]
        %v1255 = vsel %vm972, %v1251, 0
        %v1258 = vsel %vm976, %v1253, 0
        %1260 = vmatprep.subr.bf16.mxu0 0
        %1261 = vmatpush1.bf16.msra.mxu0 0
        %1262 = vmatprep.subr.bf16.mxu0 0
        %1263 = vmatpush1.bf16.msra.mxu0 0
        %1264 = vmatprep.subr.bf16.mxu0 0
        %1265 = vmatpush1.bf16.msra.mxu0 0
        %1266 = vmatprep.subr.bf16.mxu0 0
        %1267 = vmatpush1.bf16.msra.mxu0 0
        %1268 = vmatprep.subr.bf16.mxu0 0
        %1269 = vmatpush1.bf16.msra.mxu0 0
        %1270 = vmatprep.subr.bf16.mxu0 0
        %1271 = vmatpush1.bf16.msra.mxu0 0
        %1272 = vmatprep.subr.bf16.mxu0 0
        %1273 = vmatpush1.bf16.msra.mxu0 0
        %1274 = vmatprep.subr.bf16.mxu0 0
        %1275 = vmatpush1.bf16.msra.mxu0 %v1258
        %1276 = vmatprep.subr.bf16.mxu0 0
        %1277 = vmatpush2.bf16.msra.mxu0 0
        %1278 = vmatprep.subr.bf16.mxu0 0
        %1279 = vmatpush2.bf16.msra.mxu0 0
        %1280 = vmatprep.subr.bf16.mxu0 0
        %1281 = vmatpush2.bf16.msra.mxu0 0
        %1282 = vmatprep.subr.bf16.mxu0 0
        %1283 = vmatpush2.bf16.msra.mxu0 0
        %1284 = vmatprep.subr.bf16.mxu0 0
        %1285 = vmatpush2.bf16.msra.mxu0 0
        %1286 = vmatprep.subr.bf16.mxu0 0
        %1287 = vmatpush2.bf16.msra.mxu0 0
        %1288 = vmatprep.subr.bf16.mxu0 0
        %1289 = vmatpush2.bf16.msra.mxu0 0
        %1290 = vmatprep.subr.bf16.mxu0 0
        %1291 = vmatpush2.bf16.msra.mxu0 0
        %1292 = vmatprep.mubr.bf16.mxu0 0
        %1293 = vmatmul.mubr.bf16.gmra.mxu0 %v1255
        %v1294 = vpop.f32.mrf.mxu0
        %v1295 = vadd.f32 0.0, %v1294
        %v1296 = vpop.f32.mrf.mxu0
        %v1297 = vpop.f32.mrf.mxu0
        %v1298 = vpop.f32.mrf.mxu0
        %1299 = vdwg.mxu0
        %s1300 = scalar_lea.vmem [#allocation2], 12
        %v1301 = vld [vmem:[%s1300] sm:$0xf]
        %1302 = vrot.lane.b32.xlu0 %v964, 104
        %v1303 = vpop.permute.xlu0 %1302
        %v1305 = vsel %vm972, %v1303, 0
        %v1308 = vsel %vm976, %v1301, 0
        %1310 = vmatprep.subr.bf16.mxu0 0
        %1311 = vmatpush1.bf16.msra.mxu0 0
        %1312 = vmatprep.subr.bf16.mxu0 0
        %1313 = vmatpush1.bf16.msra.mxu0 0
        %1314 = vmatprep.subr.bf16.mxu0 0
        %1315 = vmatpush1.bf16.msra.mxu0 0
        %1316 = vmatprep.subr.bf16.mxu0 0
        %1317 = vmatpush1.bf16.msra.mxu0 0
        %1318 = vmatprep.subr.bf16.mxu0 0
        %1319 = vmatpush1.bf16.msra.mxu0 0
        %1320 = vmatprep.subr.bf16.mxu0 0
        %1321 = vmatpush1.bf16.msra.mxu0 0
        %1322 = vmatprep.subr.bf16.mxu0 0
        %1323 = vmatpush1.bf16.msra.mxu0 0
        %1324 = vmatprep.subr.bf16.mxu0 0
        %1325 = vmatpush1.bf16.msra.mxu0 %v1308
        %1326 = vmatprep.subr.bf16.mxu0 0
        %1327 = vmatpush2.bf16.msra.mxu0 0
        %1328 = vmatprep.subr.bf16.mxu0 0
        %1329 = vmatpush2.bf16.msra.mxu0 0
        %1330 = vmatprep.subr.bf16.mxu0 0
        %1331 = vmatpush2.bf16.msra.mxu0 0
        %1332 = vmatprep.subr.bf16.mxu0 0
        %1333 = vmatpush2.bf16.msra.mxu0 0
        %1334 = vmatprep.subr.bf16.mxu0 0
        %1335 = vmatpush2.bf16.msra.mxu0 0
        %1336 = vmatprep.subr.bf16.mxu0 0
        %1337 = vmatpush2.bf16.msra.mxu0 0
        %1338 = vmatprep.subr.bf16.mxu0 0
        %1339 = vmatpush2.bf16.msra.mxu0 0
        %1340 = vmatprep.subr.bf16.mxu0 0
        %1341 = vmatpush2.bf16.msra.mxu0 0
        %1342 = vmatprep.mubr.bf16.mxu0 0
        %1343 = vmatmul.mubr.bf16.gmra.mxu0 %v1305
        %v1344 = vpop.f32.mrf.mxu0
        %v1345 = vadd.f32 %v970, %v1344
        %v1346 = vpop.f32.mrf.mxu0
        %v1347 = vpop.f32.mrf.mxu0
        %v1348 = vpop.f32.mrf.mxu0
        %1349 = vdwg.mxu0
        %v1350 = vsel %vm972, %v1345, -inf
        %1351 = vmax.xlane.f32.xlu0 %v1350
        %v1352 = vpop.xlane.xlu0 %1351
        %v1353 = vsub.f32 %v1345, %v1352
        %v1354 = vmul.f32 %v1353, 1.442695
        %v1355 = vpow.pop %v1354
        %v1356 = vsel %vm972, %v1355, 0.0
        %1357 = vadd.xlane.f32.xlu0 %v1356
        %v1358 = vpop.xlane.xlu0 %1357
        %v1359 = vrcp.pop %v1358
        %v1360 = vmul.f32 %v1355, %v1359
        %v1361 = vpack.c.bf16 %v1360, %v1360
        %s1362 = scalar_lea.vmem [#allocation3], 12
        %v1363 = vld [vmem:[%s1362] sm:$0xf]
        %v1365 = vsel %vm972, %v1361, 0
        %v1368 = vsel %vm976, %v1363, 0
        %1370 = vmatprep.subr.bf16.mxu0 0
        %1371 = vmatpush1.bf16.msra.mxu0 0
        %1372 = vmatprep.subr.bf16.mxu0 0
        %1373 = vmatpush1.bf16.msra.mxu0 0
        %1374 = vmatprep.subr.bf16.mxu0 0
        %1375 = vmatpush1.bf16.msra.mxu0 0
        %1376 = vmatprep.subr.bf16.mxu0 0
        %1377 = vmatpush1.bf16.msra.mxu0 0
        %1378 = vmatprep.subr.bf16.mxu0 0
        %1379 = vmatpush1.bf16.msra.mxu0 0
        %1380 = vmatprep.subr.bf16.mxu0 0
        %1381 = vmatpush1.bf16.msra.mxu0 0
        %1382 = vmatprep.subr.bf16.mxu0 0
        %1383 = vmatpush1.bf16.msra.mxu0 0
        %1384 = vmatprep.subr.bf16.mxu0 0
        %1385 = vmatpush1.bf16.msra.mxu0 %v1368
        %1386 = vmatprep.subr.bf16.mxu0 0
        %1387 = vmatpush2.bf16.msra.mxu0 0
        %1388 = vmatprep.subr.bf16.mxu0 0
        %1389 = vmatpush2.bf16.msra.mxu0 0
        %1390 = vmatprep.subr.bf16.mxu0 0
        %1391 = vmatpush2.bf16.msra.mxu0 0
        %1392 = vmatprep.subr.bf16.mxu0 0
        %1393 = vmatpush2.bf16.msra.mxu0 0
        %1394 = vmatprep.subr.bf16.mxu0 0
        %1395 = vmatpush2.bf16.msra.mxu0 0
        %1396 = vmatprep.subr.bf16.mxu0 0
        %1397 = vmatpush2.bf16.msra.mxu0 0
        %1398 = vmatprep.subr.bf16.mxu0 0
        %1399 = vmatpush2.bf16.msra.mxu0 0
        %1400 = vmatprep.subr.bf16.mxu0 0
        %1401 = vmatpush2.bf16.msra.mxu0 0
        %1402 = vmatprep.mubr.bf16.mxu0 0
        %1403 = vmatmul.mubr.bf16.gmra.mxu0 %v1365
        %v1404 = vpop.f32.mrf.mxu0
        %v1405 = vadd.f32 0.0, %v1404
        %v1406 = vpop.f32.mrf.mxu0
        %v1407 = vpop.f32.mrf.mxu0
        %v1408 = vpop.f32.mrf.mxu0
        %1409 = vdwg.mxu0
        %1411 = vrot.lane.b32.xlu0 %v1185, 8
        %v1412 = vpop.permute.xlu0 %1411
        %1415 = vrot.lane.b32.xlu0 %v1295, 16
        %v1416 = vpop.permute.xlu0 %1415
        %1419 = vrot.lane.b32.xlu0 %v1405, 24
        %v1420 = vpop.permute.xlu0 %1419
        %v1422 = vsel %vm972, %v1074, %v1412
        %vm1423 = vcmask 130048
        %v1424 = vsel %vm1423, %v1422, %v1416
        %vm1425 = vcmask 195584
        %v1426 = vsel %vm1425, %v1424, %v1420
        %v1427 = vpack.c.bf16 %v1426, %v1426
        %v1428 = vld [vmem:[%s4] sm:$0xf]
        %v1429 = vld [vmem:[%s4 + $0x4] sm:$0xf]
        %v1430 = vld [vmem:[%s4 + $0x8] sm:$0xf]
        %v1431 = vld [vmem:[%s4 + $0xc] sm:$0xf]
        %v1432 = vld [vmem:[#allocation7] sm:$0x1]
        %v1434 = vlaneseq
        %v1435 = vshrl.u32 %v1434, 7
        %v1436 = vsub.s32 0, %v1435
        %v1437 = vrot.slane %v1432, %v1436
        %v1443 = vunpack.c.l.b16 %v1428
        %v1444 = vunpack.c.l.b16 %v1429
        %v1445 = vunpack.c.l.b16 %v1430
        %v1446 = vunpack.c.l.b16 %v1431
        %v1447 = vpack.c.b16 %v1444, %v1443
        %v1448 = vpack.c.b16 %v1446, %v1445
        %v1452 = vsel %vm920, %v1427, 0
        %1454 = vmatprep.subr.bf16.mxu0 0
        %1455 = vmatpush1.bf16.msra.mxu0 0
        %1456 = vmatprep.subr.bf16.mxu0 0
        %1457 = vmatpush1.bf16.msra.mxu0 0
        %1458 = vmatprep.subr.bf16.mxu0 0
        %1459 = vmatpush1.bf16.msra.mxu0 0
        %1460 = vmatprep.subr.bf16.mxu0 0
        %1461 = vmatpush1.bf16.msra.mxu0 0
        %1462 = vmatprep.subr.bf16.mxu0 0
        %1463 = vmatpush1.bf16.msra.mxu0 0
        %1464 = vmatprep.subr.bf16.mxu0 0
        %1465 = vmatpush1.bf16.msra.mxu0 0
        %1466 = vmatprep.subr.bf16.mxu0 0
        %1467 = vmatpush1.bf16.msra.mxu0 %v1448
        %1468 = vmatprep.subr.bf16.mxu0 0
        %1469 = vmatpush1.bf16.msra.mxu0 %v1447
        %1470 = vmatprep.subr.bf16.mxu0 0
        %1471 = vmatpush2.bf16.msra.mxu0 0
        %1472 = vmatprep.subr.bf16.mxu0 0
        %1473 = vmatpush2.bf16.msra.mxu0 0
        %1474 = vmatprep.subr.bf16.mxu0 0
        %1475 = vmatpush2.bf16.msra.mxu0 0
        %1476 = vmatprep.subr.bf16.mxu0 0
        %1477 = vmatpush2.bf16.msra.mxu0 0
        %1478 = vmatprep.subr.bf16.mxu0 0
        %1479 = vmatpush2.bf16.msra.mxu0 0
        %1480 = vmatprep.subr.bf16.mxu0 0
        %1481 = vmatpush2.bf16.msra.mxu0 0
        %1482 = vmatprep.subr.bf16.mxu0 0
        %1483 = vmatpush2.bf16.msra.mxu0 0
        %1484 = vmatprep.subr.bf16.mxu0 0
        %1485 = vmatpush2.bf16.msra.mxu0 0
        %1486 = vmatprep.mubr.bf16.mxu0 0
        %1487 = vmatmul.mubr.bf16.gmra.mxu0 %v1452
        %v1488 = vpop.f32.mrf.mxu0
        %v1489 = vadd.f32 %v1437, %v1488
        %v1490 = vpop.f32.mrf.mxu0
        %v1491 = vpop.f32.mrf.mxu0
        %v1492 = vpop.f32.mrf.mxu0
        %1493 = vdwg.mxu0
        %v1494 = vpack.c.bf16 %v1489, %v1489
        %v1495 = vld [vmem:[%s6] sm:$0xf]
        %v1496 = vld [vmem:[%s6 + $0x4] sm:$0xf]
        %v1497 = vld [vmem:[%s6 + $0x8] sm:$0xf]
        %v1498 = vld [vmem:[%s6 + $0xc] sm:$0xf]
        %v1499 = vld [vmem:[#allocation9] sm:$0x1]
        %v1501 = vlaneseq
        %v1502 = vshrl.u32 %v1501, 7
        %v1503 = vsub.s32 0, %v1502
        %v1504 = vrot.slane %v1499, %v1503
        %v1510 = vunpack.c.l.b16 %v1495
        %v1511 = vunpack.c.l.b16 %v1496
        %v1512 = vunpack.c.l.b16 %v1497
        %v1513 = vunpack.c.l.b16 %v1498
        %v1514 = vpack.c.b16 %v1511, %v1510
        %v1515 = vpack.c.b16 %v1513, %v1512
        %v1519 = vsel %vm920, %v1494, 0
        %1521 = vmatprep.subr.bf16.mxu0 0
        %1522 = vmatpush1.bf16.msra.mxu0 0
        %1523 = vmatprep.subr.bf16.mxu0 0
        %1524 = vmatpush1.bf16.msra.mxu0 0
        %1525 = vmatprep.subr.bf16.mxu0 0
        %1526 = vmatpush1.bf16.msra.mxu0 0
        %1527 = vmatprep.subr.bf16.mxu0 0
        %1528 = vmatpush1.bf16.msra.mxu0 0
        %1529 = vmatprep.subr.bf16.mxu0 0
        %1530 = vmatpush1.bf16.msra.mxu0 0
        %1531 = vmatprep.subr.bf16.mxu0 0
        %1532 = vmatpush1.bf16.msra.mxu0 0
        %1533 = vmatprep.subr.bf16.mxu0 0
        %1534 = vmatpush1.bf16.msra.mxu0 %v1515
        %1535 = vmatprep.subr.bf16.mxu0 0
        %1536 = vmatpush1.bf16.msra.mxu0 %v1514
        %1537 = vmatprep.subr.bf16.mxu0 0
        %1538 = vmatpush2.bf16.msra.mxu0 0
        %1539 = vmatprep.subr.bf16.mxu0 0
        %1540 = vmatpush2.bf16.msra.mxu0 0
        %1541 = vmatprep.subr.bf16.mxu0 0
        %1542 = vmatpush2.bf16.msra.mxu0 0
        %1543 = vmatprep.subr.bf16.mxu0 0
        %1544 = vmatpush2.bf16.msra.mxu0 0
        %1545 = vmatprep.subr.bf16.mxu0 0
        %1546 = vmatpush2.bf16.msra.mxu0 0
        %1547 = vmatprep.subr.bf16.mxu0 0
        %1548 = vmatpush2.bf16.msra.mxu0 0
        %1549 = vmatprep.subr.bf16.mxu0 0
        %1550 = vmatpush2.bf16.msra.mxu0 0
        %1551 = vmatprep.subr.bf16.mxu0 0
        %1552 = vmatpush2.bf16.msra.mxu0 0
        %1553 = vmatprep.mubr.bf16.mxu0 0
        %1554 = vmatmul.mubr.bf16.gmra.mxu0 %v1519
        %v1555 = vpop.f32.mrf.mxu0
        %v1556 = vadd.f32 %v1504, %v1555
        %v1557 = vpop.f32.mrf.mxu0
        %v1558 = vpop.f32.mrf.mxu0
        %v1559 = vpop.f32.mrf.mxu0
        %1560 = vdwg.mxu0
        %v1561 = vmax.f32 %v1556, 0.0
        %v1562 = vpack.c.bf16 %v1561, %v1561
        %v1563 = vld [vmem:[%s8] sm:$0xf]
        %v1564 = vld [vmem:[%s8 + $0x4] sm:$0xf]
        %v1565 = vld [vmem:[%s8 + $0x8] sm:$0xf]
        %v1566 = vld [vmem:[%s8 + $0xc] sm:$0xf]
        %v1567 = vld [vmem:[%s8 + $0x10] sm:$0xf]
        %v1568 = vld [vmem:[%s8 + $0x14] sm:$0xf]
        %v1569 = vld [vmem:[%s8 + $0x18] sm:$0xf]
        %v1570 = vld [vmem:[%s8 + $0x1c] sm:$0xf]
        %v1571 = vld [vmem:[#allocation10] sm:$0x1]
        %v1573 = vlaneseq
        %v1574 = vshrl.u32 %v1573, 7
        %v1575 = vsub.s32 0, %v1574
        %v1576 = vrot.slane %v1571, %v1575
        %v1586 = vunpack.c.l.b16 %v1563
        %v1587 = vunpack.c.l.b16 %v1564
        %v1588 = vunpack.c.l.b16 %v1565
        %v1589 = vunpack.c.l.b16 %v1566
        %v1590 = vunpack.c.l.b16 %v1567
        %v1591 = vunpack.c.l.b16 %v1568
        %v1592 = vunpack.c.l.b16 %v1569
        %v1593 = vunpack.c.l.b16 %v1570
        %v1594 = vpack.c.b16 %v1587, %v1586
        %v1595 = vpack.c.b16 %v1589, %v1588
        %v1596 = vpack.c.b16 %v1591, %v1590
        %v1597 = vpack.c.b16 %v1593, %v1592
        %vm1602 = vcmask 523264
        %v1604 = vsel %vm1602, %v1562, 0
        %1606 = vmatprep.subr.bf16.mxu0 0
        %1607 = vmatpush1.bf16.msra.mxu0 0
        %1608 = vmatprep.subr.bf16.mxu0 0
        %1609 = vmatpush1.bf16.msra.mxu0 0
        %1610 = vmatprep.subr.bf16.mxu0 0
        %1611 = vmatpush1.bf16.msra.mxu0 0
        %1612 = vmatprep.subr.bf16.mxu0 0
        %1613 = vmatpush1.bf16.msra.mxu0 0
        %1614 = vmatprep.subr.bf16.mxu0 0
        %1615 = vmatpush1.bf16.msra.mxu0 %v1597
        %1616 = vmatprep.subr.bf16.mxu0 0
        %1617 = vmatpush1.bf16.msra.mxu0 %v1596
        %1618 = vmatprep.subr.bf16.mxu0 0
        %1619 = vmatpush1.bf16.msra.mxu0 %v1595
        %1620 = vmatprep.subr.bf16.mxu0 0
        %1621 = vmatpush1.bf16.msra.mxu0 %v1594
        %1622 = vmatprep.subr.bf16.mxu0 0
        %1623 = vmatpush2.bf16.msra.mxu0 0
        %1624 = vmatprep.subr.bf16.mxu0 0
        %1625 = vmatpush2.bf16.msra.mxu0 0
        %1626 = vmatprep.subr.bf16.mxu0 0
        %1627 = vmatpush2.bf16.msra.mxu0 0
        %1628 = vmatprep.subr.bf16.mxu0 0
        %1629 = vmatpush2.bf16.msra.mxu0 0
        %1630 = vmatprep.subr.bf16.mxu0 0
        %1631 = vmatpush2.bf16.msra.mxu0 0
        %1632 = vmatprep.subr.bf16.mxu0 0
        %1633 = vmatpush2.bf16.msra.mxu0 0
        %1634 = vmatprep.subr.bf16.mxu0 0
        %1635 = vmatpush2.bf16.msra.mxu0 0
        %1636 = vmatprep.subr.bf16.mxu0 0
        %1637 = vmatpush2.bf16.msra.mxu0 0
        %1638 = vmatprep.mubr.bf16.mxu0 0
        %1639 = vmatmul.mubr.bf16.gmra.mxu0 %v1604
        %v1640 = vpop.f32.mrf.mxu0
        %v1641 = vadd.f32 %v1576, %v1640
        %v1642 = vpop.f32.mrf.mxu0
        %v1643 = vpop.f32.mrf.mxu0
        %v1644 = vpop.f32.mrf.mxu0
        %1645 = vdwg.mxu0
        %v1646 = vadd.f32 %v1641, %v899
        %v1647 = vld [vmem:[%s10] sm:$0x1]
        %v1648 = vld [vmem:[%s11] sm:$0x1]
        %v1649 = vsel %vm920, %v1646, 0.0
        %1650 = vadd.xlane.f32.xlu0 %v1649
        %v1651 = vpop.xlane.xlu0 %1650
        %v1652 = vrcp.pop 32.0
        %v1653 = vmul.f32 %v1651, %v1652
        %v1654 = vsub.f32 %v1646, %v1653
        %v1655 = vmul.f32 %v1654, %v1654
        %v1656 = vsel %vm920, %v1655, 0.0
        %1657 = vadd.xlane.f32.xlu0 %v1656
        %v1658 = vpop.xlane.xlu0 %1657
        %v1659 = vmul.f32 %v1658, %v1652
        %v1660 = vadd.f32 %v1659, 1e-05
        %v1661 = vrsqrt.pop %v1660
        %v1662 = vmul.f32 %v1654, %v1661
        %v1664 = vlaneseq
        %v1665 = vshrl.u32 %v1664, 7
        %v1666 = vsub.s32 0, %v1665
        %v1667 = vrot.slane %v1647, %v1666
        %v1669 = vmul.f32 %v1662, %v1667
        %v1671 = vlaneseq
        %v1672 = vshrl.u32 %v1671, 7
        %v1673 = vsub.s32 0, %v1672
        %v1674 = vrot.slane %v1648, %v1673
        %v1676 = vadd.f32 %v1669, %v1674
        %v1677 = vpack.c.bf16 %v1676, %v1676
        %v1678 = vld [vmem:[%s12] sm:$0xf]
        %v1679 = vld [vmem:[%s12 + $0x4] sm:$0xf]
        %v1680 = vld [vmem:[%s12 + $0x8] sm:$0xf]
        %v1681 = vld [vmem:[%s12 + $0xc] sm:$0xf]
        %v1682 = vld [vmem:[%s13] sm:$0x1]
        %v1684 = vlaneseq
        %v1685 = vshrl.u32 %v1684, 7
        %v1686 = vsub.s32 0, %v1685
        %v1687 = vrot.slane %v1682, %v1686
        %v1693 = vunpack.c.l.b16 %v1678
        %v1694 = vunpack.c.l.b16 %v1679
        %v1695 = vunpack.c.l.b16 %v1680
        %v1696 = vunpack.c.l.b16 %v1681
        %v1697 = vpack.c.b16 %v1694, %v1693
        %v1698 = vpack.c.b16 %v1696, %v1695
        %v1702 = vsel %vm920, %v1677, 0
        %1704 = vmatprep.subr.bf16.mxu0 0
        %1705 = vmatpush1.bf16.msra.mxu0 0
        %1706 = vmatprep.subr.bf16.mxu0 0
        %1707 = vmatpush1.bf16.msra.mxu0 0
        %1708 = vmatprep.subr.bf16.mxu0 0
        %1709 = vmatpush1.bf16.msra.mxu0 0
        %1710 = vmatprep.subr.bf16.mxu0 0
        %1711 = vmatpush1.bf16.msra.mxu0 0
        %1712 = vmatprep.subr.bf16.mxu0 0
        %1713 = vmatpush1.bf16.msra.mxu0 0
        %1714 = vmatprep.subr.bf16.mxu0 0
        %1715 = vmatpush1.bf16.msra.mxu0 0
        %1716 = vmatprep.subr.bf16.mxu0 0
        %1717 = vmatpush1.bf16.msra.mxu0 %v1698
        %1718 = vmatprep.subr.bf16.mxu0 0
        %1719 = vmatpush1.bf16.msra.mxu0 %v1697
        %1720 = vmatprep.subr.bf16.mxu0 0
        %1721 = vmatpush2.bf16.msra.mxu0 0
        %1722 = vmatprep.subr.bf16.mxu0 0
        %1723 = vmatpush2.bf16.msra.mxu0 0
        %1724 = vmatprep.subr.bf16.mxu0 0
        %1725 = vmatpush2.bf16.msra.mxu0 0
        %1726 = vmatprep.subr.bf16.mxu0 0
        %1727 = vmatpush2.bf16.msra.mxu0 0
        %1728 = vmatprep.subr.bf16.mxu0 0
        %1729 = vmatpush2.bf16.msra.mxu0 0
        %1730 = vmatprep.subr.bf16.mxu0 0
        %1731 = vmatpush2.bf16.msra.mxu0 0
        %1732 = vmatprep.subr.bf16.mxu0 0
        %1733 = vmatpush2.bf16.msra.mxu0 0
        %1734 = vmatprep.subr.bf16.mxu0 0
        %1735 = vmatpush2.bf16.msra.mxu0 0
        %1736 = vmatprep.mubr.bf16.mxu0 0
        %1737 = vmatmul.mubr.bf16.gmra.mxu0 %v1702
        %v1738 = vpop.f32.mrf.mxu0
        %v1739 = vadd.f32 %v1687, %v1738
        %v1740 = vpop.f32.mrf.mxu0
        %v1741 = vpop.f32.mrf.mxu0
        %v1742 = vpop.f32.mrf.mxu0
        %1743 = vdwg.mxu0
        %v1744 = vmax.f32 %v1739, 0.0
        %v1745 = vpack.c.bf16 %v1744, %v1744
        %v1746 = vld [vmem:[%s14] sm:$0xf]
        %v1747 = vld [vmem:[%s14 + $0x4] sm:$0xf]
        %v1748 = vld [vmem:[%s14 + $0x8] sm:$0xf]
        %v1749 = vld [vmem:[%s14 + $0xc] sm:$0xf]
        %v1750 = vld [vmem:[%s14 + $0x10] sm:$0xf]
        %v1751 = vld [vmem:[%s14 + $0x14] sm:$0xf]
        %v1752 = vld [vmem:[%s14 + $0x18] sm:$0xf]
        %v1753 = vld [vmem:[%s14 + $0x1c] sm:$0xf]
        %v1754 = vld [vmem:[%s15] sm:$0x1]
        %v1756 = vlaneseq
        %v1757 = vshrl.u32 %v1756, 7
        %v1758 = vsub.s32 0, %v1757
        %v1759 = vrot.slane %v1754, %v1758
        %v1769 = vunpack.c.l.b16 %v1746
        %v1770 = vunpack.c.l.b16 %v1747
        %v1771 = vunpack.c.l.b16 %v1748
        %v1772 = vunpack.c.l.b16 %v1749
        %v1773 = vunpack.c.l.b16 %v1750
        %v1774 = vunpack.c.l.b16 %v1751
        %v1775 = vunpack.c.l.b16 %v1752
        %v1776 = vunpack.c.l.b16 %v1753
        %v1777 = vpack.c.b16 %v1770, %v1769
        %v1778 = vpack.c.b16 %v1772, %v1771
        %v1779 = vpack.c.b16 %v1774, %v1773
        %v1780 = vpack.c.b16 %v1776, %v1775
        %v1786 = vsel %vm1602, %v1745, 0
        %1788 = vmatprep.subr.bf16.mxu0 0
        %1789 = vmatpush1.bf16.msra.mxu0 0
        %1790 = vmatprep.subr.bf16.mxu0 0
        %1791 = vmatpush1.bf16.msra.mxu0 0
        %1792 = vmatprep.subr.bf16.mxu0 0
        %1793 = vmatpush1.bf16.msra.mxu0 0
        %1794 = vmatprep.subr.bf16.mxu0 0
        %1795 = vmatpush1.bf16.msra.mxu0 0
        %1796 = vmatprep.subr.bf16.mxu0 0
        %1797 = vmatpush1.bf16.msra.mxu0 %v1780
        %1798 = vmatprep.subr.bf16.mxu0 0
        %1799 = vmatpush1.bf16.msra.mxu0 %v1779
        %1800 = vmatprep.subr.bf16.mxu0 0
        %1801 = vmatpush1.bf16.msra.mxu0 %v1778
        %1802 = vmatprep.subr.bf16.mxu0 0
        %1803 = vmatpush1.bf16.msra.mxu0 %v1777
        %1804 = vmatprep.subr.bf16.mxu0 0
        %1805 = vmatpush2.bf16.msra.mxu0 0
        %1806 = vmatprep.subr.bf16.mxu0 0
        %1807 = vmatpush2.bf16.msra.mxu0 0
        %1808 = vmatprep.subr.bf16.mxu0 0
        %1809 = vmatpush2.bf16.msra.mxu0 0
        %1810 = vmatprep.subr.bf16.mxu0 0
        %1811 = vmatpush2.bf16.msra.mxu0 0
        %1812 = vmatprep.subr.bf16.mxu0 0
        %1813 = vmatpush2.bf16.msra.mxu0 0
        %1814 = vmatprep.subr.bf16.mxu0 0
        %1815 = vmatpush2.bf16.msra.mxu0 0
        %1816 = vmatprep.subr.bf16.mxu0 0
        %1817 = vmatpush2.bf16.msra.mxu0 0
        %1818 = vmatprep.subr.bf16.mxu0 0
        %1819 = vmatpush2.bf16.msra.mxu0 0
        %1820 = vmatprep.mubr.bf16.mxu0 0
        %1821 = vmatmul.mubr.bf16.gmra.mxu0 %v1786
        %v1822 = vpop.f32.mrf.mxu0
        %v1823 = vadd.f32 %v1759, %v1822
        %v1824 = vpop.f32.mrf.mxu0
        %v1825 = vpop.f32.mrf.mxu0
        %v1826 = vpop.f32.mrf.mxu0
        %1827 = vdwg.mxu0
        %v1828 = vadd.f32 %v1676, %v1823
        %v1829 = vld [vmem:[%s16] sm:$0x1]
        %v1830 = vld [vmem:[%s17] sm:$0x1]
        %v1831 = vsel %vm920, %v1828, 0.0
        %1832 = vadd.xlane.f32.xlu0 %v1831
        %v1833 = vpop.xlane.xlu0 %1832
        %v1834 = vmul.f32 %v1833, %v1652
        %v1835 = vsub.f32 %v1828, %v1834
        %v1836 = vmul.f32 %v1835, %v1835
        %v1837 = vsel %vm920, %v1836, 0.0
        %1838 = vadd.xlane.f32.xlu0 %v1837
        %v1839 = vpop.xlane.xlu0 %1838
        %v1840 = vmul.f32 %v1839, %v1652
        %v1841 = vadd.f32 %v1840, 1e-05
        %v1842 = vrsqrt.pop %v1841
        %v1843 = vmul.f32 %v1835, %v1842
        %v1845 = vlaneseq
        %v1846 = vshrl.u32 %v1845, 7
        %v1847 = vsub.s32 0, %v1846
        %v1848 = vrot.slane %v1829, %v1847
        %v1850 = vmul.f32 %v1843, %v1848
        %v1852 = vlaneseq
        %v1853 = vshrl.u32 %v1852, 7
        %v1854 = vsub.s32 0, %v1853
        %v1855 = vrot.slane %v1830, %v1854
        %v1857 = vadd.f32 %v1850, %v1855
        %1858 = vst.msk [vmem:[%s652] sm:$0xff] %vm920, %v1857
        %s1859 = sand.u32 %s447, 1
        %s1860 = scalar_lea.sflag [#allocation6], %s1859
        %s1861 = sand.u32 %s447, 1
        %s1862 = smul.addr %s1861, 8
        %s1863 = scalar_lea.vmem [#allocation12], %s1862
        // Predicated region
        $region113: #{tpu_custom_call.1} parent=91 // pred_check
          %p1864 = pneg %p457
        $region114: #{tpu_custom_call.1} parent=91 // pred_check_branch
          %1866 = sbr.rel (%p1864) target = $region116
        $region115: #{tpu_custom_call.1} parent=91 // pred_region
          %s1868 = ssub.s32 128, 128
          %1869 = vsyncadd %s1860, %s1868
          %s1870 = sadd.s32 %s42, %s41
          %s1871 = smul.addr %s1870, 128
          %s1872 = scalar_lea.hbm %s18, %s1871
          %s1874 = sshll.u32 %s1863, 4
          %s1875 = int_to_ptr.vmem [resolvable:$true] %s1874
          %1877 = dma.vmem_to_hbm [thread:$0]  %s1875, 128, %s1872, %s1860
        $region116: #{tpu_custom_call.1} parent=91 // pred_fallthru
          _
      $region92: #{tpu_custom_call.1} parent=5 // pred_fallthru
        _
      %p1878 = scmp.le.s32.totalorder 2, %s32
      // Predicated region
      $region117: #{tpu_custom_call.1} parent=5 // pred_check
        %p1879 = pneg %p1878
      $region118: #{tpu_custom_call.1} parent=5 // pred_check_branch
        %1881 = sbr.rel (%p1879) target = $region120
      $region119: #{tpu_custom_call.1} parent=5 // pred_region
        %s1882 = ssub.s32 %s32, 2
        // Predicated region
        $region121: #{tpu_custom_call.1} parent=119 // pred_check
          %p1883 = pneg %p463
        $region122: #{tpu_custom_call.1} parent=119 // pred_check_branch
          %1885 = sbr.rel (%p1883) target = $region124
        $region123: #{tpu_custom_call.1} parent=119 // pred_region
          %s1886 = sand.u32 %s448, 1
          %s1887 = scalar_lea.sflag [#allocation6], %s1886
          %s1888 = sand.u32 %s448, 1
          %s1889 = smul.addr %s1888, 8
          %s1890 = scalar_lea.vmem [#allocation12], %s1889
          %1891 = dma.done %s1887, 128
        $region124: #{tpu_custom_call.1} parent=119 // pred_fallthru
          _
      $region120: #{tpu_custom_call.1} parent=5 // pred_fallthru
        _
    $region6: #{tpu_custom_call.1} parent=1 // loop_footer
      %s36 = sadd.s32 1, %s32
    $region7: #{tpu_custom_call.1} parent=1 // loop_footer_branch
      %31 = sbr.rel target = $region3
    $region8: #{tpu_custom_call.1} parent=1 // loop_exit
      _
    %1892 = vsyncpa [#allocation5], 1
    %s1893 = scalar_lea.sflag [#allocation5], 1
    %1894 = vsyncpa %s1893, 1
    %1895 = vsyncpa [#allocation8], 1
    %1896 = vsyncpa [#allocation11], 1
    %1897 = vsyncpa [#allocation6], 1
    %s1898 = scalar_lea.sflag [#allocation6], 1
    %1899 = vsyncpa %s1898, 1

</llo_original>
